<compile_context>
chip_gen: v6e
topology: v6e:2x2x1
jax: 0.10.0
libtpu: 0.0.40
codegen_flags: <defaults>
</compile_context>

<pallas_src>
import functools

import jax
import jax.numpy as jnp
from jax.experimental import pallas as pl
from jax.experimental.pallas import tpu as pltpu

LANES = 128      # TPU lane width
KH = KW = 3      # conv kernel size of the reference architecture


def _rup(v, m):
    return -(-v // m) * m


# ---------------------------------------------------------------------------
# Fused forward kernel: one grid step == B_TILE images.
#
# Row-coordinate convention (set up by the wrapper-side im2col permutation):
#   conv1 row  (n*4 + g)*r1g + p*P1w + q  holds the patch for conv1 output
#   pixel (h, w) = (2p + g//2, 2q + g%2) of image n.  MaxPool1 is therefore
#   max over g of 4 contiguous, 8-aligned row groups, and its output is
#   already compact (row p*P1w + q).  conv2 output (u, v) lives at row
#   n*r2p + u*P1w + v; rows with v >= W2 (and the alignment pad rows) hold
#   finite garbage that is never read by MaxPool2.
# ---------------------------------------------------------------------------
def _simple_cnn_kernel(x_ref, w1_ref, b1_ref, sc1_ref, sh1_ref,
                       w2_ref, b2_ref, sc2_ref, sh2_ref,
                       wf1_ref, bf1_ref, wf2_ref, bf2_ref,
                       o_ref, *,
                       b_tile, r1g, r2p, tap_offs, pool2_bases, p1w):
    f32, bf16 = jnp.float32, jnp.bfloat16

    # ---- conv1: ONE im2col matmul for the whole image tile (K = 9*Cin).
    z1 = jnp.dot(x_ref[...], w1_ref[...], preferred_element_type=f32)
    z1 = jnp.maximum(z1 + b1_ref[...], 0.0) * sc1_ref[...] + sh1_ref[...]

    # ---- maxpool1 (max of 4 aligned contiguous groups) + conv2 im2col
    #      (lane-concat of 9 shifted slices of the compact pool1 block).
    im2_blocks = []
    for n in range(b_tile):
        base = n * 4 * r1g
        p1 = jnp.maximum(
            jnp.maximum(z1[base          :base +     r1g],
                        z1[base +     r1g:base + 2 * r1g]),
            jnp.maximum(z1[base + 2 * r1g:base + 3 * r1g],
                        z1[base + 3 * r1g:base + 4 * r1g]))
        im2_blocks.append(
            jnp.concatenate([p1[o:o + r2p] for o in tap_offs], axis=1))
    im2 = (jnp.concatenate(im2_blocks, axis=0) if b_tile > 1
           else im2_blocks[0]).astype(bf16)

    # ---- conv2: ONE matmul (b_tile*r2p, 9*C1) @ (9*C1, C2).
    z2 = jnp.dot(im2, w2_ref[...], preferred_element_type=f32)
    z2 = jnp.maximum(z2 + b2_ref[...], 0.0) * sc2_ref[...] + sh2_ref[...]

    # ---- maxpool2 + flatten (NCHW flatten order is pre-baked into wf1).
    woff = (0, 1, p1w, p1w + 1)
    flat_rows = []
    for n in range(b_tile):
        pooled = []
        for s in pool2_bases:
            r = n * r2p + s
            q = [z2[r + o:r + o + 1, :] for o in woff]
            pooled.append(jnp.maximum(jnp.maximum(q[0], q[1]),
                                      jnp.maximum(q[2], q[3])))
        flat_rows.append(jnp.concatenate(pooled, axis=1))
    flat = (jnp.concatenate(flat_rows, axis=0) if b_tile > 1
            else flat_rows[0]).astype(bf16)

    # ---- fc1 -> ReLU -> fc2, batched over the tile; lane-dense (.,128) store.
    h = jnp.maximum(jnp.dot(flat, wf1_ref[...], preferred_element_type=f32)
                    + bf1_ref[...], 0.0)
    out = jnp.dot(h.astype(bf16), wf2_ref[...], preferred_element_type=f32)
    o_ref[0] = out + bf2_ref[...]


# ---------------------------------------------------------------------------
# Trace-time parameter packing (tiny jnp ops, done once per call)
# ---------------------------------------------------------------------------
def _pack_conv(layer, eps=1e-5):
    """Conv weight as a (9*Cin, Cout) bf16 im2col matrix; bias / eval-mode BN
    scale & shift as f32 (1, Cout) rows for the epilogue."""
    w, b = layer['w'], layer['b']
    kh, kw, cin, cout = w.shape
    scale = layer['gamma'] / jnp.sqrt(layer['var'] + eps)
    shift = layer['beta'] - layer['mean'] * scale
    w2d = w.reshape(kh * kw * cin, cout).astype(jnp.bfloat16)
    row = lambda v: v.reshape(1, cout).astype(jnp.float32)
    return w2d, row(b), row(scale), row(shift)


def _pack_fc1(w, b, c2, npos):
    """fc1 weight re-ordered so the lane-concatenated (pixel-major) pooled
    features multiply correctly -- folds the NCHW flatten permutation."""
    hidden = w.shape[1]
    w_pcj = jnp.transpose(w.reshape(c2, npos, hidden), (1, 0, 2))
    return (w_pcj.reshape(npos * c2, hidden).astype(jnp.bfloat16),
            b.reshape(1, hidden).astype(jnp.float32))


def _pack_fc2(w, b, classes_pad):
    hidden, classes = w.shape
    w_p = jnp.pad(w, ((0, 0), (0, classes_pad - classes))).astype(jnp.bfloat16)
    b_p = jnp.pad(b, (0, classes_pad - classes)).reshape(1, classes_pad)
    return w_p, b_p.astype(jnp.float32)


# ---------------------------------------------------------------------------
# Forward pass wrapper
# ---------------------------------------------------------------------------
def simple_cnn_forward(x_nchw, params):
    N, Cin, H0, W0 = x_nchw.shape
    H1, W1 = H0 - KH + 1, W0 - KW + 1
    P1h, P1w = H1 // 2, W1 // 2
    H2, W2 = P1h - KH + 1, P1w - KW + 1
    P2h, P2w = H2 // 2, W2 // 2
    assert P2h >= 1 and P2w >= 1

    C1 = params['l0']['w'].shape[-1]
    C2 = params['l1']['w'].shape[-1]
    classes = params['fc2']['w'].shape[1]
    assert params['l1']['w'].shape[2] == C1
    assert params['fc1']['w'].shape[0] == C2 * P2h * P2w

    K1 = KH * KW * Cin
    tap_offs = tuple(di * P1w + dj for di in range(KH) for dj in range(KW))
    pool2_bases = tuple(2 * a * P1w + 2 * b
                        for a in range(P2h) for b in range(P2w))
    r2 = (H2 - 1) * P1w + W2                  # conv2 rows needed (P1 coords)
    r2p = _rup(r2, 8)
    r1g = _rup(max(P1h * P1w, max(tap_offs) + r2p), 8)   # rows per pool group
    classes_pad = _rup(classes, LANES)

    # Batch tiling: a few images per grid step; keep >=2 steps when N >= 2 so
    # the "parallel" grid axis can be split across v7x's two TensorCores.
    b_tile = max(1, min(4, N // 2))
    n_steps = -(-N // b_tile)
    n_pad = n_steps * b_tile
    rows_per_step = b_tile * 4 * r1g

    # ---- wrapper-side layout prep (plain XLA): im2col for conv1 with rows
    #      permuted to (image, pool-window position, pool output pixel) and
    #      zero-padded so every group is sublane-aligned.
    xf = jnp.transpose(x_nchw.astype(jnp.float32), (0, 2, 3, 1))   # NHWC
    pat = jnp.concatenate(
        [xf[:, di:di + H1, dj:dj + W1, :]
         for di in range(KH) for dj in range(KW)], axis=-1)        # (N,H1,W1,K1)
    pat = pat[:, :2 * P1h, :2 * P1w, :]
    pat = pat.reshape(N, P1h, 2, P1w, 2, K1)
    pat = jnp.transpose(pat, (0, 2, 4, 1, 3, 5)).reshape(N, 4, P1h * P1w, K1)
    pat = jnp.pad(pat, ((0, n_pad - N), (0, 0), (0, r1g - P1h * P1w), (0, 0)))
    x_pat = pat.reshape(n_pad * 4 * r1g, K1).astype(jnp.bfloat16)

    w1, b1, sc1, sh1 = _pack_conv(params['l0'])
    w2, b2, sc2, sh2 = _pack_conv(params['l1'])
    wf1, bf1 = _pack_fc1(params['fc1']['w'], params['fc1']['b'], C2, P2h * P2w)
    wf2, bf2 = _pack_fc2(params['fc2']['w'], params['fc2']['b'], classes_pad)

    kernel = functools.partial(_simple_cnn_kernel, b_tile=b_tile, r1g=r1g,
                               r2p=r2p, tap_offs=tap_offs,
                               pool2_bases=pool2_bases, p1w=P1w)

    def full(arr):      # whole-array block, resident across grid steps
        return pl.BlockSpec(arr.shape, lambda i, _nd=arr.ndim: (0,) * _nd)

    out = pl.pallas_call(
        kernel,
        out_shape=jax.ShapeDtypeStruct((n_steps, b_tile, classes_pad),
                                       jnp.float32),
        grid_spec=pltpu.PrefetchScalarGridSpec(
            num_scalar_prefetch=0,
            grid=(n_steps,),
            in_specs=[pl.BlockSpec((rows_per_step, K1), lambda i: (i, 0)),
                      full(w1), full(b1), full(sc1), full(sh1),
                      full(w2), full(b2), full(sc2), full(sh2),
                      full(wf1), full(bf1), full(wf2), full(bf2)],
            out_specs=pl.BlockSpec((1, b_tile, classes_pad),
                                   lambda i: (i, 0, 0))),
        compiler_params=pltpu.CompilerParams(
            dimension_semantics=("parallel",)),
    )(x_pat, w1, b1, sc1, sh1, w2, b2, sc2, sh2, wf1, bf1, wf2, bf2)
    return out.reshape(n_pad, classes_pad)[:N, :classes]


# ---------------------------------------------------------------------------
# Pure-JAX reference (mirrors the PyTorch module, eval-mode BN) for self-check
# ---------------------------------------------------------------------------
def reference_forward(x_nchw, params, eps=1e-5):
    hp = jax.lax.Precision.HIGHEST
    x = jnp.transpose(x_nchw.astype(jnp.float32), (0, 2, 3, 1))
    for name in ('l0', 'l1'):
        p = params[name]
        x = jax.lax.conv_general_dilated(
            x, p['w'], (1, 1), 'VALID',
            dimension_numbers=('NHWC', 'HWIO', 'NHWC'), precision=hp)
        x = jnp.maximum(x + p['b'], 0.0)
        scale = p['gamma'] / jnp.sqrt(p['var'] + eps)
        x = x * scale + (p['beta'] - p['mean'] * scale)
        N, H, W, C = x.shape
        x = x[:, :H // 2 * 2, :W // 2 * 2, :].reshape(
            N, H // 2, 2, W // 2, 2, C).max(axis=(2, 4))
    N = x.shape[0]
    x = jnp.transpose(x, (0, 3, 1, 2)).reshape(N, -1)    # NCHW flatten order
    x = jnp.maximum(jnp.dot(x, params['fc1']['w'], precision=hp)
                    + params['fc1']['b'], 0.0)
    return jnp.dot(x, params['fc2']['w'], precision=hp) + params['fc2']['b']


# ---------------------------------------------------------------------------
# Deterministic synthetic parameters
# ---------------------------------------------------------------------------
def bn_params(c):
    r = jnp.arange(c, dtype=jnp.float32)
    return dict(gamma=1.0 + 0.01 * r, beta=0.01 * r,
                mean=0.02 * r, var=1.0 + 0.03 * r)


def init_params(key, cin=4, hidden=32, num_classes=10, reshaped=128):
    ks = jax.random.split(key, 8)
    p = {}
    p['l0'] = dict(w=0.1 * jax.random.normal(ks[0], (3, 3, cin, 16), jnp.float32),
                   b=0.1 * jax.random.normal(ks[1], (16,), jnp.float32),
                   **bn_params(16))
    p['l1'] = dict(w=0.1 * jax.random.normal(ks[2], (3, 3, 16, 32), jnp.float32),
                   b=0.1 * jax.random.normal(ks[3], (32,), jnp.float32),
                   **bn_params(32))
    p['fc1'] = dict(w=0.1 * jax.random.normal(ks[4], (reshaped, hidden), jnp.float32),
                    b=0.1 * jax.random.normal(ks[5], (hidden,), jnp.float32))
    p['fc2'] = dict(w=0.1 * jax.random.normal(ks[6], (hidden, num_classes), jnp.float32),
                    b=0.1 * jax.random.normal(ks[7], (num_classes,), jnp.float32))
    return p


# ---------------------------------------------------------------------------

if __name__ == "__main__":
    key = jax.random.PRNGKey(0)
    k_x, k_p = jax.random.split(key)

    # batch=2, channels=4, spatial=16x16
    # conv(3): 16->14, pool: ->7, conv(3): ->5, pool: ->2 => reshaped = 2*2*32 = 128
    x = jax.random.normal(k_x, (2, 4, 16, 16), jnp.float32)
    params = init_params(k_p, cin=4, hidden=32, num_classes=10, reshaped=128)

    fwd = jax.jit(simple_cnn_forward)
    out = jax.block_until_ready(fwd(x, params))

    assert out.shape == (2, 10), out.shape
    assert out.dtype == jnp.float32

    ref = jax.block_until_ready(reference_forward(x, params))
    # Tolerance sized for bf16 matmul operands (f32 accumulation), which the
    # performance review requested; f32-path agreement was ~1e-3.
    assert jnp.allclose(out, ref, rtol=6e-2, atol=6e-2), (out, ref)

    print("KERNEL_OK")
</pallas_src>

<mosaic_0001>
module attributes {stable_mosaic.version = 11 : i64} {
  func.func @_simple_cnn_kernel(%arg0: i32, %arg1: memref<224x36xbf16, #tpu.memory_space<vmem>>, %arg2: memref<36x16xbf16, #tpu.memory_space<vmem>>, %arg3: memref<1x16xf32, #tpu.memory_space<vmem>>, %arg4: memref<1x16xf32, #tpu.memory_space<vmem>>, %arg5: memref<1x16xf32, #tpu.memory_space<vmem>>, %arg6: memref<144x32xbf16, #tpu.memory_space<vmem>>, %arg7: memref<1x32xf32, #tpu.memory_space<vmem>>, %arg8: memref<1x32xf32, #tpu.memory_space<vmem>>, %arg9: memref<1x32xf32, #tpu.memory_space<vmem>>, %arg10: memref<128x32xbf16, #tpu.memory_space<vmem>>, %arg11: memref<1x32xf32, #tpu.memory_space<vmem>>, %arg12: memref<32x128xbf16, #tpu.memory_space<vmem>>, %arg13: memref<1x128xf32, #tpu.memory_space<vmem>>, %arg14: memref<1x1x128xf32, #tpu.memory_space<vmem>>) attributes {dimension_semantics = [#tpu.dimension_semantics<parallel>], iteration_bounds = array<i64: 2>, scalar_prefetch = 0 : i64, scratch_operands = 0 : i64, tpu.core_type = #tpu.core_type<tc>, window_params = [{transform_indices = @transform_0, window_bounds = array<i64: 224, 36>}, {pipeline_mode = #tpu.pipeline_mode<synchronous>, transform_indices = @transform_1, window_bounds = array<i64: 36, 16>}, {pipeline_mode = #tpu.pipeline_mode<synchronous>, transform_indices = @transform_2, window_bounds = array<i64: 1, 16>}, {pipeline_mode = #tpu.pipeline_mode<synchronous>, transform_indices = @transform_3, window_bounds = array<i64: 1, 16>}, {pipeline_mode = #tpu.pipeline_mode<synchronous>, transform_indices = @transform_4, window_bounds = array<i64: 1, 16>}, {pipeline_mode = #tpu.pipeline_mode<synchronous>, transform_indices = @transform_5, window_bounds = array<i64: 144, 32>}, {pipeline_mode = #tpu.pipeline_mode<synchronous>, transform_indices = @transform_6, window_bounds = array<i64: 1, 32>}, {pipeline_mode = #tpu.pipeline_mode<synchronous>, transform_indices = @transform_7, window_bounds = array<i64: 1, 32>}, {pipeline_mode = #tpu.pipeline_mode<synchronous>, transform_indices = @transform_8, window_bounds = array<i64: 1, 32>}, {pipeline_mode = #tpu.pipeline_mode<synchronous>, transform_indices = @transform_9, window_bounds = array<i64: 128, 32>}, {pipeline_mode = #tpu.pipeline_mode<synchronous>, transform_indices = @transform_10, window_bounds = array<i64: 1, 32>}, {pipeline_mode = #tpu.pipeline_mode<synchronous>, transform_indices = @transform_11, window_bounds = array<i64: 32, 128>}, {pipeline_mode = #tpu.pipeline_mode<synchronous>, transform_indices = @transform_12, window_bounds = array<i64: 1, 128>}, {transform_indices = @transform_13, window_bounds = array<i64: 1, 1, 128>}]} {
    %c0 = arith.constant 0 : index
    %c0_0 = arith.constant 0 : index
    %0 = vector.load %arg1[%c0, %c0_0] : memref<224x36xbf16, #tpu.memory_space<vmem>>, vector<224x36xbf16>
    %c0_1 = arith.constant 0 : index
    %c0_2 = arith.constant 0 : index
    %1 = vector.load %arg2[%c0_1, %c0_2] : memref<36x16xbf16, #tpu.memory_space<vmem>>, vector<36x16xbf16>
    %cst = arith.constant dense<0.000000e+00> : vector<224x16xf32>
    %2 = tpu.matmul %0, %1, %cst {dimension_numbers = #tpu.dot_dimension_numbers<[1], [0], [0], [1], [0, 0, 1, 1], [], []>} : vector<224x36xbf16>, vector<36x16xbf16>, vector<224x16xf32> -> vector<224x16xf32>
    %c0_3 = arith.constant 0 : index
    %c0_4 = arith.constant 0 : index
    %3 = vector.load %arg3[%c0_3, %c0_4] : memref<1x16xf32, #tpu.memory_space<vmem>>, vector<1x16xf32>
    %4 = vector.broadcast %3 : vector<1x16xf32> to vector<224x16xf32>
    %5 = arith.addf %2, %4 : vector<224x16xf32>
    %cst_5 = arith.constant 0.000000e+00 : f32
    %6 = vector.broadcast %cst_5 : f32 to vector<224x16xf32>
    %7 = arith.maximumf %5, %6 : vector<224x16xf32>
    %c0_6 = arith.constant 0 : index
    %c0_7 = arith.constant 0 : index
    %8 = vector.load %arg4[%c0_6, %c0_7] : memref<1x16xf32, #tpu.memory_space<vmem>>, vector<1x16xf32>
    %9 = vector.broadcast %8 : vector<1x16xf32> to vector<224x16xf32>
    %10 = arith.mulf %7, %9 : vector<224x16xf32>
    %c0_8 = arith.constant 0 : index
    %c0_9 = arith.constant 0 : index
    %11 = vector.load %arg5[%c0_8, %c0_9] : memref<1x16xf32, #tpu.memory_space<vmem>>, vector<1x16xf32>
    %12 = vector.broadcast %11 : vector<1x16xf32> to vector<224x16xf32>
    %13 = arith.addf %10, %12 : vector<224x16xf32>
    %14 = vector.extract_strided_slice %13 {offsets = [0, 0], sizes = [56, 16], strides = [1, 1]} : vector<224x16xf32> to vector<56x16xf32>
    %15 = vector.extract_strided_slice %13 {offsets = [56, 0], sizes = [56, 16], strides = [1, 1]} : vector<224x16xf32> to vector<56x16xf32>
    %16 = arith.maximumf %14, %15 : vector<56x16xf32>
    %17 = vector.extract_strided_slice %13 {offsets = [112, 0], sizes = [56, 16], strides = [1, 1]} : vector<224x16xf32> to vector<56x16xf32>
    %18 = vector.extract_strided_slice %13 {offsets = [168, 0], sizes = [56, 16], strides = [1, 1]} : vector<224x16xf32> to vector<56x16xf32>
    %19 = arith.maximumf %17, %18 : vector<56x16xf32>
    %20 = arith.maximumf %16, %19 : vector<56x16xf32>
    %21 = vector.extract_strided_slice %20 {offsets = [0, 0], sizes = [40, 16], strides = [1, 1]} : vector<56x16xf32> to vector<40x16xf32>
    %22 = vector.extract_strided_slice %20 {offsets = [1, 0], sizes = [40, 16], strides = [1, 1]} : vector<56x16xf32> to vector<40x16xf32>
    %23 = vector.extract_strided_slice %20 {offsets = [2, 0], sizes = [40, 16], strides = [1, 1]} : vector<56x16xf32> to vector<40x16xf32>
    %24 = vector.extract_strided_slice %20 {offsets = [7, 0], sizes = [40, 16], strides = [1, 1]} : vector<56x16xf32> to vector<40x16xf32>
    %25 = vector.extract_strided_slice %20 {offsets = [8, 0], sizes = [40, 16], strides = [1, 1]} : vector<56x16xf32> to vector<40x16xf32>
    %26 = vector.extract_strided_slice %20 {offsets = [9, 0], sizes = [40, 16], strides = [1, 1]} : vector<56x16xf32> to vector<40x16xf32>
    %27 = vector.extract_strided_slice %20 {offsets = [14, 0], sizes = [40, 16], strides = [1, 1]} : vector<56x16xf32> to vector<40x16xf32>
    %28 = vector.extract_strided_slice %20 {offsets = [15, 0], sizes = [40, 16], strides = [1, 1]} : vector<56x16xf32> to vector<40x16xf32>
    %29 = vector.extract_strided_slice %20 {offsets = [16, 0], sizes = [40, 16], strides = [1, 1]} : vector<56x16xf32> to vector<40x16xf32>
    %30 = tpu.concatenate %21, %22, %23, %24, %25, %26, %27, %28, %29 in 1 : vector<40x16xf32>, vector<40x16xf32>, vector<40x16xf32>, vector<40x16xf32>, vector<40x16xf32>, vector<40x16xf32>, vector<40x16xf32>, vector<40x16xf32>, vector<40x16xf32> -> vector<40x144xf32>
    %31 = arith.truncf %30 : vector<40x144xf32> to vector<40x144xbf16>
    %c0_10 = arith.constant 0 : index
    %c0_11 = arith.constant 0 : index
    %32 = vector.load %arg6[%c0_10, %c0_11] : memref<144x32xbf16, #tpu.memory_space<vmem>>, vector<144x32xbf16>
    %cst_12 = arith.constant dense<0.000000e+00> : vector<40x32xf32>
    %33 = tpu.matmul %31, %32, %cst_12 {dimension_numbers = #tpu.dot_dimension_numbers<[1], [0], [0], [1], [0, 0, 1, 1], [], []>} : vector<40x144xbf16>, vector<144x32xbf16>, vector<40x32xf32> -> vector<40x32xf32>
    %c0_13 = arith.constant 0 : index
    %c0_14 = arith.constant 0 : index
    %34 = vector.load %arg7[%c0_13, %c0_14] : memref<1x32xf32, #tpu.memory_space<vmem>>, vector<1x32xf32>
    %35 = vector.broadcast %34 : vector<1x32xf32> to vector<40x32xf32>
    %36 = arith.addf %33, %35 : vector<40x32xf32>
    %cst_15 = arith.constant 0.000000e+00 : f32
    %37 = vector.broadcast %cst_15 : f32 to vector<40x32xf32>
    %38 = arith.maximumf %36, %37 : vector<40x32xf32>
    %c0_16 = arith.constant 0 : index
    %c0_17 = arith.constant 0 : index
    %39 = vector.load %arg8[%c0_16, %c0_17] : memref<1x32xf32, #tpu.memory_space<vmem>>, vector<1x32xf32>
    %40 = vector.broadcast %39 : vector<1x32xf32> to vector<40x32xf32>
    %41 = arith.mulf %38, %40 : vector<40x32xf32>
    %c0_18 = arith.constant 0 : index
    %c0_19 = arith.constant 0 : index
    %42 = vector.load %arg9[%c0_18, %c0_19] : memref<1x32xf32, #tpu.memory_space<vmem>>, vector<1x32xf32>
    %43 = vector.broadcast %42 : vector<1x32xf32> to vector<40x32xf32>
    %44 = arith.addf %41, %43 : vector<40x32xf32>
    %45 = vector.extract_strided_slice %44 {offsets = [0, 0], sizes = [1, 32], strides = [1, 1]} : vector<40x32xf32> to vector<1x32xf32>
    %46 = vector.extract_strided_slice %44 {offsets = [1, 0], sizes = [1, 32], strides = [1, 1]} : vector<40x32xf32> to vector<1x32xf32>
    %47 = vector.extract_strided_slice %44 {offsets = [7, 0], sizes = [1, 32], strides = [1, 1]} : vector<40x32xf32> to vector<1x32xf32>
    %48 = vector.extract_strided_slice %44 {offsets = [8, 0], sizes = [1, 32], strides = [1, 1]} : vector<40x32xf32> to vector<1x32xf32>
    %49 = arith.maximumf %45, %46 : vector<1x32xf32>
    %50 = arith.maximumf %47, %48 : vector<1x32xf32>
    %51 = arith.maximumf %49, %50 : vector<1x32xf32>
    %52 = vector.extract_strided_slice %44 {offsets = [2, 0], sizes = [1, 32], strides = [1, 1]} : vector<40x32xf32> to vector<1x32xf32>
    %53 = vector.extract_strided_slice %44 {offsets = [3, 0], sizes = [1, 32], strides = [1, 1]} : vector<40x32xf32> to vector<1x32xf32>
    %54 = vector.extract_strided_slice %44 {offsets = [9, 0], sizes = [1, 32], strides = [1, 1]} : vector<40x32xf32> to vector<1x32xf32>
    %55 = vector.extract_strided_slice %44 {offsets = [10, 0], sizes = [1, 32], strides = [1, 1]} : vector<40x32xf32> to vector<1x32xf32>
    %56 = arith.maximumf %52, %53 : vector<1x32xf32>
    %57 = arith.maximumf %54, %55 : vector<1x32xf32>
    %58 = arith.maximumf %56, %57 : vector<1x32xf32>
    %59 = vector.extract_strided_slice %44 {offsets = [14, 0], sizes = [1, 32], strides = [1, 1]} : vector<40x32xf32> to vector<1x32xf32>
    %60 = vector.extract_strided_slice %44 {offsets = [15, 0], sizes = [1, 32], strides = [1, 1]} : vector<40x32xf32> to vector<1x32xf32>
    %61 = vector.extract_strided_slice %44 {offsets = [21, 0], sizes = [1, 32], strides = [1, 1]} : vector<40x32xf32> to vector<1x32xf32>
    %62 = vector.extract_strided_slice %44 {offsets = [22, 0], sizes = [1, 32], strides = [1, 1]} : vector<40x32xf32> to vector<1x32xf32>
    %63 = arith.maximumf %59, %60 : vector<1x32xf32>
    %64 = arith.maximumf %61, %62 : vector<1x32xf32>
    %65 = arith.maximumf %63, %64 : vector<1x32xf32>
    %66 = vector.extract_strided_slice %44 {offsets = [16, 0], sizes = [1, 32], strides = [1, 1]} : vector<40x32xf32> to vector<1x32xf32>
    %67 = vector.extract_strided_slice %44 {offsets = [17, 0], sizes = [1, 32], strides = [1, 1]} : vector<40x32xf32> to vector<1x32xf32>
    %68 = vector.extract_strided_slice %44 {offsets = [23, 0], sizes = [1, 32], strides = [1, 1]} : vector<40x32xf32> to vector<1x32xf32>
    %69 = vector.extract_strided_slice %44 {offsets = [24, 0], sizes = [1, 32], strides = [1, 1]} : vector<40x32xf32> to vector<1x32xf32>
    %70 = arith.maximumf %66, %67 : vector<1x32xf32>
    %71 = arith.maximumf %68, %69 : vector<1x32xf32>
    %72 = arith.maximumf %70, %71 : vector<1x32xf32>
    %73 = tpu.concatenate %51, %58, %65, %72 in 1 : vector<1x32xf32>, vector<1x32xf32>, vector<1x32xf32>, vector<1x32xf32> -> vector<1x128xf32>
    %74 = arith.truncf %73 : vector<1x128xf32> to vector<1x128xbf16>
    %c0_20 = arith.constant 0 : index
    %c0_21 = arith.constant 0 : index
    %75 = vector.load %arg10[%c0_20, %c0_21] : memref<128x32xbf16, #tpu.memory_space<vmem>>, vector<128x32xbf16>
    %cst_22 = arith.constant dense<0.000000e+00> : vector<1x32xf32>
    %76 = tpu.matmul %74, %75, %cst_22 {dimension_numbers = #tpu.dot_dimension_numbers<[1], [0], [0], [1], [0, 0, 1, 1], [], []>} : vector<1x128xbf16>, vector<128x32xbf16>, vector<1x32xf32> -> vector<1x32xf32>
    %c0_23 = arith.constant 0 : index
    %c0_24 = arith.constant 0 : index
    %77 = vector.load %arg11[%c0_23, %c0_24] : memref<1x32xf32, #tpu.memory_space<vmem>>, vector<1x32xf32>
    %78 = arith.addf %76, %77 : vector<1x32xf32>
    %cst_25 = arith.constant 0.000000e+00 : f32
    %79 = vector.broadcast %cst_25 : f32 to vector<1x32xf32>
    %80 = arith.maximumf %78, %79 : vector<1x32xf32>
    %81 = arith.truncf %80 : vector<1x32xf32> to vector<1x32xbf16>
    %c0_26 = arith.constant 0 : index
    %c0_27 = arith.constant 0 : index
    %82 = vector.load %arg12[%c0_26, %c0_27] : memref<32x128xbf16, #tpu.memory_space<vmem>>, vector<32x128xbf16>
    %cst_28 = arith.constant dense<0.000000e+00> : vector<1x128xf32>
    %83 = tpu.matmul %81, %82, %cst_28 {dimension_numbers = #tpu.dot_dimension_numbers<[1], [0], [0], [1], [0, 0, 1, 1], [], []>} : vector<1x32xbf16>, vector<32x128xbf16>, vector<1x128xf32> -> vector<1x128xf32>
    %c0_29 = arith.constant 0 : index
    %c0_30 = arith.constant 0 : index
    %84 = vector.load %arg13[%c0_29, %c0_30] : memref<1x128xf32, #tpu.memory_space<vmem>>, vector<1x128xf32>
    %85 = arith.addf %83, %84 : vector<1x128xf32>
    %c0_31 = arith.constant 0 : index
    %c0_32 = arith.constant 0 : index
    %c0_33 = arith.constant 0 : index
    %86 = vector.load %arg14[%c0_31, %c0_32, %c0_33] : memref<1x1x128xf32, #tpu.memory_space<vmem>>, vector<1x1x128xf32>
    %87 = vector.shape_cast %86 : vector<1x1x128xf32> to vector<1x128xf32>
    %88 = vector.shape_cast %85 : vector<1x128xf32> to vector<1x1x128xf32>
    tpu.vector_store %arg14[%c0_31, %c0_32, %c0_33], %88 {strides = array<i32>} : memref<1x1x128xf32, #tpu.memory_space<vmem>>, vector<1x1x128xf32>,
    return
  }
  func.func @transform_0(%arg0: i32) -> (i32, i32) {
    %c0_i32 = arith.constant 0 : i32
    %c0_i32_0 = arith.constant 0 : i32
    return %arg0, %c0_i32 : i32, i32
  }
  func.func @transform_1(%arg0: i32) -> (i32, i32) {
    %c0_i32 = arith.constant 0 : i32
    %c0_i32_0 = arith.constant 0 : i32
    %c0_i32_1 = arith.constant 0 : i32
    return %c0_i32, %c0_i32_0 : i32, i32
  }
  func.func @transform_2(%arg0: i32) -> (i32, i32) {
    %c0_i32 = arith.constant 0 : i32
    %c0_i32_0 = arith.constant 0 : i32
    %c0_i32_1 = arith.constant 0 : i32
    return %c0_i32, %c0_i32_0 : i32, i32
  }
  func.func @transform_3(%arg0: i32) -> (i32, i32) {
    %c0_i32 = arith.constant 0 : i32
    %c0_i32_0 = arith.constant 0 : i32
    %c0_i32_1 = arith.constant 0 : i32
    return %c0_i32, %c0_i32_0 : i32, i32
  }
  func.func @transform_4(%arg0: i32) -> (i32, i32) {
    %c0_i32 = arith.constant 0 : i32
    %c0_i32_0 = arith.constant 0 : i32
    %c0_i32_1 = arith.constant 0 : i32
    return %c0_i32, %c0_i32_0 : i32, i32
  }
  func.func @transform_5(%arg0: i32) -> (i32, i32) {
    %c0_i32 = arith.constant 0 : i32
    %c0_i32_0 = arith.constant 0 : i32
    %c0_i32_1 = arith.constant 0 : i32
    return %c0_i32, %c0_i32_0 : i32, i32
  }
  func.func @transform_6(%arg0: i32) -> (i32, i32) {
    %c0_i32 = arith.constant 0 : i32
    %c0_i32_0 = arith.constant 0 : i32
    %c0_i32_1 = arith.constant 0 : i32
    return %c0_i32, %c0_i32_0 : i32, i32
  }
  func.func @transform_7(%arg0: i32) -> (i32, i32) {
    %c0_i32 = arith.constant 0 : i32
    %c0_i32_0 = arith.constant 0 : i32
    %c0_i32_1 = arith.constant 0 : i32
    return %c0_i32, %c0_i32_0 : i32, i32
  }
  func.func @transform_8(%arg0: i32) -> (i32, i32) {
    %c0_i32 = arith.constant 0 : i32
    %c0_i32_0 = arith.constant 0 : i32
    %c0_i32_1 = arith.constant 0 : i32
    return %c0_i32, %c0_i32_0 : i32, i32
  }
  func.func @transform_9(%arg0: i32) -> (i32, i32) {
    %c0_i32 = arith.constant 0 : i32
    %c0_i32_0 = arith.constant 0 : i32
    %c0_i32_1 = arith.constant 0 : i32
    return %c0_i32, %c0_i32_0 : i32, i32
  }
  func.func @transform_10(%arg0: i32) -> (i32, i32) {
    %c0_i32 = arith.constant 0 : i32
    %c0_i32_0 = arith.constant 0 : i32
    %c0_i32_1 = arith.constant 0 : i32
    return %c0_i32, %c0_i32_0 : i32, i32
  }
  func.func @transform_11(%arg0: i32) -> (i32, i32) {
    %c0_i32 = arith.constant 0 : i32
    %c0_i32_0 = arith.constant 0 : i32
    %c0_i32_1 = arith.constant 0 : i32
    return %c0_i32, %c0_i32_0 : i32, i32
  }
  func.func @transform_12(%arg0: i32) -> (i32, i32) {
    %c0_i32 = arith.constant 0 : i32
    %c0_i32_0 = arith.constant 0 : i32
    %c0_i32_1 = arith.constant 0 : i32
    return %c0_i32, %c0_i32_0 : i32, i32
  }
  func.func @transform_13(%arg0: i32) -> (i32, i32, i32) {
    %c0_i32 = arith.constant 0 : i32
    %c0_i32_0 = arith.constant 0 : i32
    %c0_i32_1 = arith.constant 0 : i32
    return %arg0, %c0_i32, %c0_i32_0 : i32, i32, i32
  }
}

</mosaic_0001>

<llo_original>
// kernel: simple_cnn_forward.1
$region0: #{simple_cnn_forward.1}
  #allocation0 [shape = 'u32[]', space=smem, size = 0x4, offset = 0x4, fixed_abs, tag = 'smem constant byte address 0x4 - core index']
  #allocation1 [shape = 'u32[144,128]{1,0:T(1,128)}', space=vmem, size = 0x12000, scoped, tag = 'internal scratch']
  %s0 = inlined_call_operand.vmem [shape: bf16[448,36], index: 0, kind: input, shape index: {}]
  %s1 = inlined_call_operand.vmem [shape: bf16[36,16], index: 1, kind: input, shape index: {}]
  %s2 = inlined_call_operand.vmem [shape: f32[1,16], index: 2, kind: input, shape index: {}]
  %s3 = inlined_call_operand.vmem [shape: f32[1,16], index: 3, kind: input, shape index: {}]
  %s4 = inlined_call_operand.vmem [shape: f32[1,16], index: 4, kind: input, shape index: {}]
  %s5 = inlined_call_operand.vmem [shape: bf16[144,32], index: 5, kind: input, shape index: {}]
  %s6 = inlined_call_operand.vmem [shape: f32[1,32], index: 6, kind: input, shape index: {}]
  %s7 = inlined_call_operand.vmem [shape: f32[1,32], index: 7, kind: input, shape index: {}]
  %s8 = inlined_call_operand.vmem [shape: f32[1,32], index: 8, kind: input, shape index: {}]
  %s9 = inlined_call_operand.vmem [shape: bf16[128,32], index: 9, kind: input, shape index: {}]
  %s10 = inlined_call_operand.vmem [shape: f32[1,32], index: 10, kind: input, shape index: {}]
  %s11 = inlined_call_operand.vmem [shape: bf16[32,128], index: 11, kind: input, shape index: {}]
  %s12 = inlined_call_operand.vmem [shape: f32[1,128], index: 12, kind: input, shape index: {}]
  %s13 = inlined_call_operand.hbm [shape: f32[2,1,128], index: 13, kind: output, shape index: {}]
  %s14 = sld [smem:[#allocation0]]
  $region85: #{simple_cnn_forward.1} parent=0
    _
  %s16 = ssub.s32 1, %s14
  %s17 = scalar_select 0, %s16, %s14
  $region1: #{simple_cnn_forward.1} parent=0
    #allocation2 [shape = 'u8[1024]{0}', space=vmem, size = 0x400, scoped, tag = 'output window, operand 0']
    #allocation3 [shape = 's32[2]{0}', space=sflag, size = 0x8, scoped, tag = 'scoped memory for simple_cnn_forward.1']
    %18 = vsyncpa [#allocation3], 0
    %s19 = scalar_lea.sflag [#allocation3], 1
    %20 = vsyncpa %s19, 0
    loop: start=0, step=1, limit=4
    $region2: #{simple_cnn_forward.1} parent=1 // loop_pre_header
      _
    $region3: #{simple_cnn_forward.1} parent=1 // loop_header
      %s22 = sphi 0, %s26
      %p23 = scmp.ge.s32.totalorder %s22, 4
      %s32 = sphi 0, %s34
      %s35 = sphi 0, %s32
      %s36 = sphi 0, %s35
      %s52 = sphi 0, %s36
      %s56 = sphi 0, %s56
      %s58 = sphi 0, %s56
      %s59 = sphi 0, %s58
      %s73 = sphi 0, %s59
      %s77 = sphi 0, %s77
      %s79 = sphi 0, %s77
      %s80 = sphi 0, %s79
      %s94 = sphi 0, %s80
      %s98 = sphi 0, %s98
      %s100 = sphi 0, %s98
      %s101 = sphi 0, %s100
      %s115 = sphi 0, %s101
      %s119 = sphi 0, %s119
      %s121 = sphi 0, %s119
      %s122 = sphi 0, %s121
      %s136 = sphi 0, %s122
      %s140 = sphi 0, %s140
      %s142 = sphi 0, %s140
      %s143 = sphi 0, %s142
      %s157 = sphi 0, %s143
      %s161 = sphi 0, %s161
      %s163 = sphi 0, %s161
      %s164 = sphi 0, %s163
      %s178 = sphi 0, %s164
      %s182 = sphi 0, %s182
      %s184 = sphi 0, %s182
      %s185 = sphi 0, %s184
      %s199 = sphi 0, %s185
      %s203 = sphi 0, %s203
      %s205 = sphi 0, %s203
      %s206 = sphi 0, %s205
      %s220 = sphi 0, %s206
      %s224 = sphi 0, %s224
      %s226 = sphi 0, %s224
      %s227 = sphi 0, %s226
      %s241 = sphi 0, %s227
      %s245 = sphi 0, %s245
      %s247 = sphi 0, %s245
      %s248 = sphi 0, %s247
      %s262 = sphi 0, %s248
      %s266 = sphi 0, %s266
      %s268 = sphi 0, %s266
      %s269 = sphi 0, %s268
      %s283 = sphi 0, %s269
      %s287 = sphi 0, %s287
      %s289 = sphi 0, %s287
      %s290 = sphi 0, %s289
      %s304 = sphi 0, %s290
      %s310 = sphi 0, %s312
      %s313 = sphi 0, %s310
      %s314 = sphi 0, %s313
      %s330 = sphi 0, %s314
    $region4: #{simple_cnn_forward.1} parent=1 // loop_header_branch
      %25 = sbr.rel (%p23) target = $region8
    $region5: #{simple_cnn_forward.1} parent=1 // loop_body
      %s27 = ssub.s32 %s22, 1
      %s28 = ssub.s32 %s22, 2
      %s29 = sadd.s32 %s22, 1
      %s30 = ssub.s32 %s22, %s29
      %p31 = scmp.eq.s32.totalorder %s30, 0
      %s33 = sadd.s32 %s32, 1
      %s34 = scalar_select %p31, %s32, %s33
      %p37 = pneg %p31
      %p38 = scmp.eq.s32.totalorder %s22, 1
      %p39 = por %p37, %p38
      %p40 = scmp.ne.s32.totalorder %s32, %s35
      %p41 = scmp.eq.s32.totalorder %s22, 0
      %p42 = por %p40, %p41
      %p43 = scmp.ne.s32.totalorder %s32, %s35
      %p44 = scmp.eq.s32.totalorder %s27, 1
      %p45 = por %p43, %p44
      %p46 = scmp.ne.s32.totalorder %s35, %s36
      %p47 = scmp.eq.s32.totalorder %s27, 0
      %p48 = por %p46, %p47
      %p49 = scmp.ne.s32.totalorder %s35, %s36
      %p50 = scmp.eq.s32.totalorder %s28, 1
      %p51 = por %p49, %p50
      %p53 = scmp.ne.s32.totalorder %s36, %s52
      %p54 = scmp.eq.s32.totalorder %s28, 0
      %p55 = por %p53, %p54
      %s57 = sadd.s32 %s56, 1
      %p60 = scmp.eq.s32.totalorder %s22, 1
      %p61 = scmp.ne.s32.totalorder %s56, %s58
      %p62 = scmp.eq.s32.totalorder %s22, 0
      %p63 = por %p61, %p62
      %p64 = scmp.ne.s32.totalorder %s56, %s58
      %p65 = scmp.eq.s32.totalorder %s27, 1
      %p66 = por %p64, %p65
      %p67 = scmp.ne.s32.totalorder %s58, %s59
      %p68 = scmp.eq.s32.totalorder %s27, 0
      %p69 = por %p67, %p68
      %p70 = scmp.ne.s32.totalorder %s58, %s59
      %p71 = scmp.eq.s32.totalorder %s28, 1
      %p72 = por %p70, %p71
      %p74 = scmp.ne.s32.totalorder %s59, %s73
      %p75 = scmp.eq.s32.totalorder %s28, 0
      %p76 = por %p74, %p75
      %s78 = sadd.s32 %s77, 1
      %p81 = scmp.eq.s32.totalorder %s22, 1
      %p82 = scmp.ne.s32.totalorder %s77, %s79
      %p83 = scmp.eq.s32.totalorder %s22, 0
      %p84 = por %p82, %p83
      %p85 = scmp.ne.s32.totalorder %s77, %s79
      %p86 = scmp.eq.s32.totalorder %s27, 1
      %p87 = por %p85, %p86
      %p88 = scmp.ne.s32.totalorder %s79, %s80
      %p89 = scmp.eq.s32.totalorder %s27, 0
      %p90 = por %p88, %p89
      %p91 = scmp.ne.s32.totalorder %s79, %s80
      %p92 = scmp.eq.s32.totalorder %s28, 1
      %p93 = por %p91, %p92
      %p95 = scmp.ne.s32.totalorder %s80, %s94
      %p96 = scmp.eq.s32.totalorder %s28, 0
      %p97 = por %p95, %p96
      %s99 = sadd.s32 %s98, 1
      %p102 = scmp.eq.s32.totalorder %s22, 1
      %p103 = scmp.ne.s32.totalorder %s98, %s100
      %p104 = scmp.eq.s32.totalorder %s22, 0
      %p105 = por %p103, %p104
      %p106 = scmp.ne.s32.totalorder %s98, %s100
      %p107 = scmp.eq.s32.totalorder %s27, 1
      %p108 = por %p106, %p107
      %p109 = scmp.ne.s32.totalorder %s100, %s101
      %p110 = scmp.eq.s32.totalorder %s27, 0
      %p111 = por %p109, %p110
      %p112 = scmp.ne.s32.totalorder %s100, %s101
      %p113 = scmp.eq.s32.totalorder %s28, 1
      %p114 = por %p112, %p113
      %p116 = scmp.ne.s32.totalorder %s101, %s115
      %p117 = scmp.eq.s32.totalorder %s28, 0
      %p118 = por %p116, %p117
      %s120 = sadd.s32 %s119, 1
      %p123 = scmp.eq.s32.totalorder %s22, 1
      %p124 = scmp.ne.s32.totalorder %s119, %s121
      %p125 = scmp.eq.s32.totalorder %s22, 0
      %p126 = por %p124, %p125
      %p127 = scmp.ne.s32.totalorder %s119, %s121
      %p128 = scmp.eq.s32.totalorder %s27, 1
      %p129 = por %p127, %p128
      %p130 = scmp.ne.s32.totalorder %s121, %s122
      %p131 = scmp.eq.s32.totalorder %s27, 0
      %p132 = por %p130, %p131
      %p133 = scmp.ne.s32.totalorder %s121, %s122
      %p134 = scmp.eq.s32.totalorder %s28, 1
      %p135 = por %p133, %p134
      %p137 = scmp.ne.s32.totalorder %s122, %s136
      %p138 = scmp.eq.s32.totalorder %s28, 0
      %p139 = por %p137, %p138
      %s141 = sadd.s32 %s140, 1
      %p144 = scmp.eq.s32.totalorder %s22, 1
      %p145 = scmp.ne.s32.totalorder %s140, %s142
      %p146 = scmp.eq.s32.totalorder %s22, 0
      %p147 = por %p145, %p146
      %p148 = scmp.ne.s32.totalorder %s140, %s142
      %p149 = scmp.eq.s32.totalorder %s27, 1
      %p150 = por %p148, %p149
      %p151 = scmp.ne.s32.totalorder %s142, %s143
      %p152 = scmp.eq.s32.totalorder %s27, 0
      %p153 = por %p151, %p152
      %p154 = scmp.ne.s32.totalorder %s142, %s143
      %p155 = scmp.eq.s32.totalorder %s28, 1
      %p156 = por %p154, %p155
      %p158 = scmp.ne.s32.totalorder %s143, %s157
      %p159 = scmp.eq.s32.totalorder %s28, 0
      %p160 = por %p158, %p159
      %s162 = sadd.s32 %s161, 1
      %p165 = scmp.eq.s32.totalorder %s22, 1
      %p166 = scmp.ne.s32.totalorder %s161, %s163
      %p167 = scmp.eq.s32.totalorder %s22, 0
      %p168 = por %p166, %p167
      %p169 = scmp.ne.s32.totalorder %s161, %s163
      %p170 = scmp.eq.s32.totalorder %s27, 1
      %p171 = por %p169, %p170
      %p172 = scmp.ne.s32.totalorder %s163, %s164
      %p173 = scmp.eq.s32.totalorder %s27, 0
      %p174 = por %p172, %p173
      %p175 = scmp.ne.s32.totalorder %s163, %s164
      %p176 = scmp.eq.s32.totalorder %s28, 1
      %p177 = por %p175, %p176
      %p179 = scmp.ne.s32.totalorder %s164, %s178
      %p180 = scmp.eq.s32.totalorder %s28, 0
      %p181 = por %p179, %p180
      %s183 = sadd.s32 %s182, 1
      %p186 = scmp.eq.s32.totalorder %s22, 1
      %p187 = scmp.ne.s32.totalorder %s182, %s184
      %p188 = scmp.eq.s32.totalorder %s22, 0
      %p189 = por %p187, %p188
      %p190 = scmp.ne.s32.totalorder %s182, %s184
      %p191 = scmp.eq.s32.totalorder %s27, 1
      %p192 = por %p190, %p191
      %p193 = scmp.ne.s32.totalorder %s184, %s185
      %p194 = scmp.eq.s32.totalorder %s27, 0
      %p195 = por %p193, %p194
      %p196 = scmp.ne.s32.totalorder %s184, %s185
      %p197 = scmp.eq.s32.totalorder %s28, 1
      %p198 = por %p196, %p197
      %p200 = scmp.ne.s32.totalorder %s185, %s199
      %p201 = scmp.eq.s32.totalorder %s28, 0
      %p202 = por %p200, %p201
      %s204 = sadd.s32 %s203, 1
      %p207 = scmp.eq.s32.totalorder %s22, 1
      %p208 = scmp.ne.s32.totalorder %s203, %s205
      %p209 = scmp.eq.s32.totalorder %s22, 0
      %p210 = por %p208, %p209
      %p211 = scmp.ne.s32.totalorder %s203, %s205
      %p212 = scmp.eq.s32.totalorder %s27, 1
      %p213 = por %p211, %p212
      %p214 = scmp.ne.s32.totalorder %s205, %s206
      %p215 = scmp.eq.s32.totalorder %s27, 0
      %p216 = por %p214, %p215
      %p217 = scmp.ne.s32.totalorder %s205, %s206
      %p218 = scmp.eq.s32.totalorder %s28, 1
      %p219 = por %p217, %p218
      %p221 = scmp.ne.s32.totalorder %s206, %s220
      %p222 = scmp.eq.s32.totalorder %s28, 0
      %p223 = por %p221, %p222
      %s225 = sadd.s32 %s224, 1
      %p228 = scmp.eq.s32.totalorder %s22, 1
      %p229 = scmp.ne.s32.totalorder %s224, %s226
      %p230 = scmp.eq.s32.totalorder %s22, 0
      %p231 = por %p229, %p230
      %p232 = scmp.ne.s32.totalorder %s224, %s226
      %p233 = scmp.eq.s32.totalorder %s27, 1
      %p234 = por %p232, %p233
      %p235 = scmp.ne.s32.totalorder %s226, %s227
      %p236 = scmp.eq.s32.totalorder %s27, 0
      %p237 = por %p235, %p236
      %p238 = scmp.ne.s32.totalorder %s226, %s227
      %p239 = scmp.eq.s32.totalorder %s28, 1
      %p240 = por %p238, %p239
      %p242 = scmp.ne.s32.totalorder %s227, %s241
      %p243 = scmp.eq.s32.totalorder %s28, 0
      %p244 = por %p242, %p243
      %s246 = sadd.s32 %s245, 1
      %p249 = scmp.eq.s32.totalorder %s22, 1
      %p250 = scmp.ne.s32.totalorder %s245, %s247
      %p251 = scmp.eq.s32.totalorder %s22, 0
      %p252 = por %p250, %p251
      %p253 = scmp.ne.s32.totalorder %s245, %s247
      %p254 = scmp.eq.s32.totalorder %s27, 1
      %p255 = por %p253, %p254
      %p256 = scmp.ne.s32.totalorder %s247, %s248
      %p257 = scmp.eq.s32.totalorder %s27, 0
      %p258 = por %p256, %p257
      %p259 = scmp.ne.s32.totalorder %s247, %s248
      %p260 = scmp.eq.s32.totalorder %s28, 1
      %p261 = por %p259, %p260
      %p263 = scmp.ne.s32.totalorder %s248, %s262
      %p264 = scmp.eq.s32.totalorder %s28, 0
      %p265 = por %p263, %p264
      %s267 = sadd.s32 %s266, 1
      %p270 = scmp.eq.s32.totalorder %s22, 1
      %p271 = scmp.ne.s32.totalorder %s266, %s268
      %p272 = scmp.eq.s32.totalorder %s22, 0
      %p273 = por %p271, %p272
      %p274 = scmp.ne.s32.totalorder %s266, %s268
      %p275 = scmp.eq.s32.totalorder %s27, 1
      %p276 = por %p274, %p275
      %p277 = scmp.ne.s32.totalorder %s268, %s269
      %p278 = scmp.eq.s32.totalorder %s27, 0
      %p279 = por %p277, %p278
      %p280 = scmp.ne.s32.totalorder %s268, %s269
      %p281 = scmp.eq.s32.totalorder %s28, 1
      %p282 = por %p280, %p281
      %p284 = scmp.ne.s32.totalorder %s269, %s283
      %p285 = scmp.eq.s32.totalorder %s28, 0
      %p286 = por %p284, %p285
      %s288 = sadd.s32 %s287, 1
      %p291 = scmp.eq.s32.totalorder %s22, 1
      %p292 = scmp.ne.s32.totalorder %s287, %s289
      %p293 = scmp.eq.s32.totalorder %s22, 0
      %p294 = por %p292, %p293
      %p295 = scmp.ne.s32.totalorder %s287, %s289
      %p296 = scmp.eq.s32.totalorder %s27, 1
      %p297 = por %p295, %p296
      %p298 = scmp.ne.s32.totalorder %s289, %s290
      %p299 = scmp.eq.s32.totalorder %s27, 0
      %p300 = por %p298, %p299
      %p301 = scmp.ne.s32.totalorder %s289, %s290
      %p302 = scmp.eq.s32.totalorder %s28, 1
      %p303 = por %p301, %p302
      %p305 = scmp.ne.s32.totalorder %s290, %s304
      %p306 = scmp.eq.s32.totalorder %s28, 0
      %p307 = por %p305, %p306
      %s308 = ssub.s32 %s22, %s29
      %p309 = scmp.eq.s32.totalorder %s308, 0
      %s311 = sadd.s32 %s310, 1
      %s312 = scalar_select %p309, %s310, %s311
      %p315 = pneg %p309
      %p316 = scmp.eq.s32.totalorder %s22, 1
      %p317 = por %p315, %p316
      %p318 = scmp.ne.s32.totalorder %s310, %s313
      %p319 = scmp.eq.s32.totalorder %s22, 0
      %p320 = por %p318, %p319
      %p321 = scmp.ne.s32.totalorder %s310, %s313
      %p322 = scmp.eq.s32.totalorder %s27, 1
      %p323 = por %p321, %p322
      %p324 = scmp.ne.s32.totalorder %s313, %s314
      %p325 = scmp.eq.s32.totalorder %s27, 0
      %p326 = por %p324, %p325
      %p327 = scmp.ne.s32.totalorder %s313, %s314
      %p328 = scmp.eq.s32.totalorder %s28, 1
      %p329 = por %p327, %p328
      %p331 = scmp.ne.s32.totalorder %s314, %s330
      %p332 = scmp.eq.s32.totalorder %s28, 0
      %p333 = por %p331, %p332
      %p334 = scmp.le.s32.totalorder 1, %s22
      %p335 = scmp.lt.s32.totalorder %s22, 3
      %p336 = pnand %p334, %p335
      %p337 = pneg %p336
      // Predicated region
      $region9: #{simple_cnn_forward.1} parent=5 // pred_check
        _
      $region10: #{simple_cnn_forward.1} parent=5 // pred_check_branch
        %339 = sbr.rel (%p336) target = $region12
      $region11: #{simple_cnn_forward.1} parent=5 // pred_region
        %s340 = ssub.s32 %s22, 1
        // Predicated region
        $region13: #{simple_cnn_forward.1} parent=11 // pred_check
          %p341 = pneg %p69
        $region14: #{simple_cnn_forward.1} parent=11 // pred_check_branch
          %343 = sbr.rel (%p341) target = $region16
        $region15: #{simple_cnn_forward.1} parent=11 // pred_region
          _
        $region16: #{simple_cnn_forward.1} parent=11 // pred_fallthru
          _
        // Predicated region
        $region17: #{simple_cnn_forward.1} parent=11 // pred_check
          %p344 = pneg %p90
        $region18: #{simple_cnn_forward.1} parent=11 // pred_check_branch
          %346 = sbr.rel (%p344) target = $region20
        $region19: #{simple_cnn_forward.1} parent=11 // pred_region
          _
        $region20: #{simple_cnn_forward.1} parent=11 // pred_fallthru
          _
        // Predicated region
        $region21: #{simple_cnn_forward.1} parent=11 // pred_check
          %p347 = pneg %p111
        $region22: #{simple_cnn_forward.1} parent=11 // pred_check_branch
          %349 = sbr.rel (%p347) target = $region24
        $region23: #{simple_cnn_forward.1} parent=11 // pred_region
          _
        $region24: #{simple_cnn_forward.1} parent=11 // pred_fallthru
          _
        // Predicated region
        $region25: #{simple_cnn_forward.1} parent=11 // pred_check
          %p350 = pneg %p132
        $region26: #{simple_cnn_forward.1} parent=11 // pred_check_branch
          %352 = sbr.rel (%p350) target = $region28
        $region27: #{simple_cnn_forward.1} parent=11 // pred_region
          _
        $region28: #{simple_cnn_forward.1} parent=11 // pred_fallthru
          _
        // Predicated region
        $region29: #{simple_cnn_forward.1} parent=11 // pred_check
          %p353 = pneg %p153
        $region30: #{simple_cnn_forward.1} parent=11 // pred_check_branch
          %355 = sbr.rel (%p353) target = $region32
        $region31: #{simple_cnn_forward.1} parent=11 // pred_region
          _
        $region32: #{simple_cnn_forward.1} parent=11 // pred_fallthru
          _
        // Predicated region
        $region33: #{simple_cnn_forward.1} parent=11 // pred_check
          %p356 = pneg %p174
        $region34: #{simple_cnn_forward.1} parent=11 // pred_check_branch
          %358 = sbr.rel (%p356) target = $region36
        $region35: #{simple_cnn_forward.1} parent=11 // pred_region
          _
        $region36: #{simple_cnn_forward.1} parent=11 // pred_fallthru
          _
        // Predicated region
        $region37: #{simple_cnn_forward.1} parent=11 // pred_check
          %p359 = pneg %p195
        $region38: #{simple_cnn_forward.1} parent=11 // pred_check_branch
          %361 = sbr.rel (%p359) target = $region40
        $region39: #{simple_cnn_forward.1} parent=11 // pred_region
          _
        $region40: #{simple_cnn_forward.1} parent=11 // pred_fallthru
          _
        // Predicated region
        $region41: #{simple_cnn_forward.1} parent=11 // pred_check
          %p362 = pneg %p216
        $region42: #{simple_cnn_forward.1} parent=11 // pred_check_branch
          %364 = sbr.rel (%p362) target = $region44
        $region43: #{simple_cnn_forward.1} parent=11 // pred_region
          _
        $region44: #{simple_cnn_forward.1} parent=11 // pred_fallthru
          _
        // Predicated region
        $region45: #{simple_cnn_forward.1} parent=11 // pred_check
          %p365 = pneg %p237
        $region46: #{simple_cnn_forward.1} parent=11 // pred_check_branch
          %367 = sbr.rel (%p365) target = $region48
        $region47: #{simple_cnn_forward.1} parent=11 // pred_region
          _
        $region48: #{simple_cnn_forward.1} parent=11 // pred_fallthru
          _
        // Predicated region
        $region49: #{simple_cnn_forward.1} parent=11 // pred_check
          %p368 = pneg %p258
        $region50: #{simple_cnn_forward.1} parent=11 // pred_check_branch
          %370 = sbr.rel (%p368) target = $region52
        $region51: #{simple_cnn_forward.1} parent=11 // pred_region
          _
        $region52: #{simple_cnn_forward.1} parent=11 // pred_fallthru
          _
        // Predicated region
        $region53: #{simple_cnn_forward.1} parent=11 // pred_check
          %p371 = pneg %p279
        $region54: #{simple_cnn_forward.1} parent=11 // pred_check_branch
          %373 = sbr.rel (%p371) target = $region56
        $region55: #{simple_cnn_forward.1} parent=11 // pred_region
          _
        $region56: #{simple_cnn_forward.1} parent=11 // pred_fallthru
          _
        // Predicated region
        $region57: #{simple_cnn_forward.1} parent=11 // pred_check
          %p374 = pneg %p300
        $region58: #{simple_cnn_forward.1} parent=11 // pred_check_branch
          %376 = sbr.rel (%p374) target = $region60
        $region59: #{simple_cnn_forward.1} parent=11 // pred_region
          _
        $region60: #{simple_cnn_forward.1} parent=11 // pred_fallthru
          _
      $region12: #{simple_cnn_forward.1} parent=5 // pred_fallthru
        _
      %p377 = scmp.lt.s32.totalorder %s22, 2
      // Predicated region
      $region61: #{simple_cnn_forward.1} parent=5 // pred_check
        %p378 = pneg %p377
      $region62: #{simple_cnn_forward.1} parent=5 // pred_check_branch
        %380 = sbr.rel (%p378) target = $region64
      $region63: #{simple_cnn_forward.1} parent=5 // pred_region
        // Predicated region
        $region65: #{simple_cnn_forward.1} parent=63 // pred_check
          %p381 = pneg %p42
        $region66: #{simple_cnn_forward.1} parent=63 // pred_check_branch
          %383 = sbr.rel (%p381) target = $region68
        $region67: #{simple_cnn_forward.1} parent=63 // pred_region
          %s384 = smul.u32 28, %s22
          %p385 = scmp.lt.s32.totalorder %s384, 55
          %s386 = scalar_select %p385, %s384, 55
          %s387 = smul.addr %s386, 4
          %s388 = scalar_lea.vmem %s0, %s387
          %s389 = smul.u32 28, %s22
        $region68: #{simple_cnn_forward.1} parent=63 // pred_fallthru
          _
      $region64: #{simple_cnn_forward.1} parent=5 // pred_fallthru
        _
      %p390 = scmp.le.s32.totalorder 1, %s22
      %p391 = scmp.lt.s32.totalorder %s22, 3
      %p392 = pnand %p390, %p391
      %p393 = pneg %p392
      // Predicated region
      $region69: #{simple_cnn_forward.1} parent=5 // pred_check
        _
      $region70: #{simple_cnn_forward.1} parent=5 // pred_check_branch
        %395 = sbr.rel (%p392) target = $region72
      $region71: #{simple_cnn_forward.1} parent=5 // pred_region
        %s396 = ssub.s32 %s22, 1
        %s397 = smul.u32 28, %s27
        %p398 = scmp.lt.s32.totalorder %s397, 55
        %s399 = scalar_select %p398, %s397, 55
        %s400 = smul.addr %s399, 4
        %s401 = scalar_lea.vmem %s0, %s400
        %p402 = pneg %p48
        %p403 = pneg %p45
        %p404 = pneg %p69
        %p405 = pneg %p66
        %p406 = pneg %p90
        %p407 = pneg %p87
        %p408 = pneg %p111
        %p409 = pneg %p108
        %p410 = pneg %p132
        %p411 = pneg %p129
        %p412 = pneg %p153
        %p413 = pneg %p150
        %p414 = pneg %p174
        %p415 = pneg %p171
        %p416 = pneg %p195
        %p417 = pneg %p192
        %p418 = pneg %p216
        %p419 = pneg %p213
        %p420 = pneg %p237
        %p421 = pneg %p234
        %p422 = pneg %p258
        %p423 = pneg %p255
        %p424 = pneg %p279
        %p425 = pneg %p276
        %p426 = pneg %p300
        %p427 = pneg %p297
        %p428 = pneg %p326
        %p429 = pneg %p323
        %s430 = sand.u32 %s313, 1
        %s431 = scalar_lea.sflag [#allocation3], %s430
        %s432 = sand.u32 %s313, 1
        %s433 = scalar_lea.vmem [#allocation2], %s432
        %s434 = smul.u32 28, %s27
        %p435 = scmp.lt.s32.totalorder %s434, 55
        %s436 = scalar_select %p435, %s434, 55
        %s437 = smul.addr %s436, 4
        %s438 = scalar_lea.vmem %s0, %s437
        %s439 = smul.u32 28, %s27
        %v441 = vld [vmem:[%s438] sm:$0xf]
        %v442 = vld [vmem:[%s438 + $0x4] sm:$0xf]
        %v443 = vld [vmem:[%s438 + $0x8] sm:$0xf]
        %v444 = vld [vmem:[%s438 + $0xc] sm:$0xf]
        %v445 = vld [vmem:[%s438 + $0x10] sm:$0xf]
        %v446 = vld [vmem:[%s438 + $0x14] sm:$0xf]
        %v447 = vld [vmem:[%s438 + $0x18] sm:$0xf]
        %v448 = vld [vmem:[%s438 + $0x1c] sm:$0xf]
        %v449 = vld [vmem:[%s438 + $0x20] sm:$0xf]
        %v450 = vld [vmem:[%s438 + $0x24] sm:$0xf]
        %v451 = vld [vmem:[%s438 + $0x28] sm:$0xf]
        %v452 = vld [vmem:[%s438 + $0x2c] sm:$0xf]
        %v453 = vld [vmem:[%s438 + $0x30] sm:$0xf]
        %v454 = vld [vmem:[%s438 + $0x34] sm:$0xf]
        %v455 = vld [vmem:[%s438 + $0x38] sm:$0xf]
        %v456 = vld [vmem:[%s438 + $0x3c] sm:$0xf]
        %v457 = vld [vmem:[%s438 + $0x40] sm:$0xf]
        %v458 = vld [vmem:[%s438 + $0x44] sm:$0xf]
        %v459 = vld [vmem:[%s438 + $0x48] sm:$0xf]
        %v460 = vld [vmem:[%s438 + $0x4c] sm:$0xf]
        %v461 = vld [vmem:[%s438 + $0x50] sm:$0xf]
        %v462 = vld [vmem:[%s438 + $0x54] sm:$0xf]
        %v463 = vld [vmem:[%s438 + $0x58] sm:$0xf]
        %v464 = vld [vmem:[%s438 + $0x5c] sm:$0xf]
        %v465 = vld [vmem:[%s438 + $0x60] sm:$0xf]
        %v466 = vld [vmem:[%s438 + $0x64] sm:$0xf]
        %v467 = vld [vmem:[%s438 + $0x68] sm:$0xf]
        %v468 = vld [vmem:[%s438 + $0x6c] sm:$0xf]
        %v469 = vld [vmem:[%s1] sm:$0xf]
        %v470 = vld [vmem:[%s1 + $0x4] sm:$0xf]
        %v471 = vld [vmem:[%s1 + $0x8] sm:$0xf]
        %v472 = vld [vmem:[%s1 + $0xc] sm:$0xf]
        %v473 = vld [vmem:[%s1 + $0x10] sm:$0x3]
        %v474 = vld [vmem:[%s2] sm:$0x1]
        %v476 = vlaneseq
        %v477 = vshrl.u32 %v476, 7
        %v478 = vsub.s32 0, %v477
        %v479 = vrot.slane %v474, %v478
        %v509 = vunpack.c.l.b16 %v441
        %v510 = vunpack.c.l.b16 %v442
        %v511 = vunpack.c.l.b16 %v443
        %v512 = vunpack.c.l.b16 %v444
        %v513 = vunpack.c.l.b16 %v445
        %v514 = vunpack.c.l.b16 %v446
        %v515 = vunpack.c.l.b16 %v447
        %v516 = vunpack.c.l.b16 %v448
        %v517 = vunpack.c.l.b16 %v449
        %v518 = vunpack.c.l.b16 %v450
        %v519 = vunpack.c.l.b16 %v451
        %v520 = vunpack.c.l.b16 %v452
        %v521 = vunpack.c.l.b16 %v453
        %v522 = vunpack.c.l.b16 %v454
        %v523 = vunpack.c.l.b16 %v455
        %v524 = vunpack.c.l.b16 %v456
        %v525 = vunpack.c.l.b16 %v457
        %v526 = vunpack.c.l.b16 %v458
        %v527 = vunpack.c.l.b16 %v459
        %v528 = vunpack.c.l.b16 %v460
        %v529 = vunpack.c.l.b16 %v461
        %v530 = vunpack.c.l.b16 %v462
        %v531 = vunpack.c.l.b16 %v463
        %v532 = vunpack.c.l.b16 %v464
        %v533 = vunpack.c.l.b16 %v465
        %v534 = vunpack.c.l.b16 %v466
        %v535 = vunpack.c.l.b16 %v467
        %v536 = vunpack.c.l.b16 %v468
        %v537 = vpack.c.b16 %v510, %v509
        %v538 = vpack.c.b16 %v512, %v511
        %v539 = vpack.c.b16 %v514, %v513
        %v540 = vpack.c.b16 %v516, %v515
        %v541 = vpack.c.b16 %v518, %v517
        %v542 = vpack.c.b16 %v520, %v519
        %v543 = vpack.c.b16 %v522, %v521
        %v544 = vpack.c.b16 %v524, %v523
        %v545 = vpack.c.b16 %v526, %v525
        %v546 = vpack.c.b16 %v528, %v527
        %v547 = vpack.c.b16 %v530, %v529
        %v548 = vpack.c.b16 %v532, %v531
        %v549 = vpack.c.b16 %v534, %v533
        %v550 = vpack.c.b16 %v536, %v535
        %v556 = vunpack.c.l.b16 %v469
        %v557 = vunpack.c.l.b16 %v470
        %v558 = vunpack.c.l.b16 %v471
        %v559 = vunpack.c.l.b16 %v472
        %v560 = vunpack.c.l.b16 %v473
        %v561 = vpack.c.b16 %v557, %v556
        %v562 = vpack.c.b16 %v559, %v558
        %v563 = vpack.c.b16 %v560, %v560
        %vm566 = vcmask 293888
        %v568 = vsel %vm566, %v537, 0
        %v571 = vsel %vm566, %v538, 0
        %v574 = vsel %vm566, %v539, 0
        %v577 = vsel %vm566, %v540, 0
        %v580 = vsel %vm566, %v541, 0
        %v583 = vsel %vm566, %v542, 0
        %v586 = vsel %vm566, %v543, 0
        %v589 = vsel %vm566, %v544, 0
        %v592 = vsel %vm566, %v545, 0
        %v595 = vsel %vm566, %v546, 0
        %v598 = vsel %vm566, %v547, 0
        %v601 = vsel %vm566, %v548, 0
        %v604 = vsel %vm566, %v549, 0
        %v607 = vsel %vm566, %v550, 0
        %vm609 = vcmask 1041408
        %v611 = vsel %vm609, %v563, 0
        %613 = vmatprep.subr.bf16.mxu0 0
        %614 = vmatpush1.bf16.msra.mxu0 0
        %615 = vmatprep.subr.bf16.mxu0 0
        %616 = vmatpush1.bf16.msra.mxu0 0
        %617 = vmatprep.subr.bf16.mxu0 0
        %618 = vmatpush1.bf16.msra.mxu0 0
        %619 = vmatprep.subr.bf16.mxu0 0
        %620 = vmatpush1.bf16.msra.mxu0 0
        %621 = vmatprep.subr.bf16.mxu0 0
        %622 = vmatpush1.bf16.msra.mxu0 0
        %623 = vmatprep.subr.bf16.mxu0 0
        %624 = vmatpush1.bf16.msra.mxu0 %v611
        %625 = vmatprep.subr.bf16.mxu0 0
        %626 = vmatpush1.bf16.msra.mxu0 %v562
        %627 = vmatprep.subr.bf16.mxu0 0
        %628 = vmatpush1.bf16.msra.mxu0 %v561
        %629 = vmatprep.subr.bf16.mxu0 0
        %630 = vmatpush2.bf16.msra.mxu0 0
        %631 = vmatprep.subr.bf16.mxu0 0
        %632 = vmatpush2.bf16.msra.mxu0 0
        %633 = vmatprep.subr.bf16.mxu0 0
        %634 = vmatpush2.bf16.msra.mxu0 0
        %635 = vmatprep.subr.bf16.mxu0 0
        %636 = vmatpush2.bf16.msra.mxu0 0
        %637 = vmatprep.subr.bf16.mxu0 0
        %638 = vmatpush2.bf16.msra.mxu0 0
        %639 = vmatprep.subr.bf16.mxu0 0
        %640 = vmatpush2.bf16.msra.mxu0 0
        %641 = vmatprep.subr.bf16.mxu0 0
        %642 = vmatpush2.bf16.msra.mxu0 0
        %643 = vmatprep.subr.bf16.mxu0 0
        %644 = vmatpush2.bf16.msra.mxu0 0
        %645 = vmatprep.mubr.bf16.mxu0 0
        %646 = vmatmul.mubr.bf16.gmra.mxu0 %v568
        %v647 = vpop.f32.mrf.mxu0
        %v648 = vadd.f32 %v479, %v647
        %v649 = vpop.f32.mrf.mxu0
        %v650 = vpop.f32.mrf.mxu0
        %v651 = vadd.f32 %v479, %v650
        %v652 = vpop.f32.mrf.mxu0
        %653 = vmatprep.mubr.bf16.mxu0 0
        %654 = vmatmul.mubr.bf16.gmra.mxu0 %v571
        %v655 = vpop.f32.mrf.mxu0
        %v656 = vadd.f32 %v479, %v655
        %v657 = vpop.f32.mrf.mxu0
        %v658 = vpop.f32.mrf.mxu0
        %v659 = vadd.f32 %v479, %v658
        %v660 = vpop.f32.mrf.mxu0
        %661 = vmatprep.mubr.bf16.mxu0 0
        %662 = vmatmul.mubr.bf16.gmra.mxu0 %v574
        %v663 = vpop.f32.mrf.mxu0
        %v664 = vadd.f32 %v479, %v663
        %v665 = vpop.f32.mrf.mxu0
        %v666 = vpop.f32.mrf.mxu0
        %v667 = vadd.f32 %v479, %v666
        %v668 = vpop.f32.mrf.mxu0
        %669 = vmatprep.mubr.bf16.mxu0 0
        %670 = vmatmul.mubr.bf16.gmra.mxu0 %v577
        %v671 = vpop.f32.mrf.mxu0
        %v672 = vadd.f32 %v479, %v671
        %v673 = vpop.f32.mrf.mxu0
        %v674 = vpop.f32.mrf.mxu0
        %v675 = vadd.f32 %v479, %v674
        %v676 = vpop.f32.mrf.mxu0
        %677 = vmatprep.mubr.bf16.mxu0 0
        %678 = vmatmul.mubr.bf16.gmra.mxu0 %v580
        %v679 = vpop.f32.mrf.mxu0
        %v680 = vadd.f32 %v479, %v679
        %v681 = vpop.f32.mrf.mxu0
        %v682 = vpop.f32.mrf.mxu0
        %v683 = vadd.f32 %v479, %v682
        %v684 = vpop.f32.mrf.mxu0
        %685 = vmatprep.mubr.bf16.mxu0 0
        %686 = vmatmul.mubr.bf16.gmra.mxu0 %v583
        %v687 = vpop.f32.mrf.mxu0
        %v688 = vadd.f32 %v479, %v687
        %v689 = vpop.f32.mrf.mxu0
        %v690 = vpop.f32.mrf.mxu0
        %v691 = vadd.f32 %v479, %v690
        %v692 = vpop.f32.mrf.mxu0
        %693 = vmatprep.mubr.bf16.mxu0 0
        %694 = vmatmul.mubr.bf16.gmra.mxu0 %v586
        %v695 = vpop.f32.mrf.mxu0
        %v696 = vadd.f32 %v479, %v695
        %v697 = vpop.f32.mrf.mxu0
        %v698 = vpop.f32.mrf.mxu0
        %v699 = vadd.f32 %v479, %v698
        %v700 = vpop.f32.mrf.mxu0
        %701 = vmatprep.mubr.bf16.mxu0 0
        %702 = vmatmul.mubr.bf16.gmra.mxu0 %v589
        %v703 = vpop.f32.mrf.mxu0
        %v704 = vadd.f32 %v479, %v703
        %v705 = vpop.f32.mrf.mxu0
        %v706 = vpop.f32.mrf.mxu0
        %v707 = vadd.f32 %v479, %v706
        %v708 = vpop.f32.mrf.mxu0
        %709 = vmatprep.mubr.bf16.mxu0 0
        %710 = vmatmul.mubr.bf16.gmra.mxu0 %v592
        %v711 = vpop.f32.mrf.mxu0
        %v712 = vadd.f32 %v479, %v711
        %v713 = vpop.f32.mrf.mxu0
        %v714 = vpop.f32.mrf.mxu0
        %v715 = vadd.f32 %v479, %v714
        %v716 = vpop.f32.mrf.mxu0
        %717 = vmatprep.mubr.bf16.mxu0 0
        %718 = vmatmul.mubr.bf16.gmra.mxu0 %v595
        %v719 = vpop.f32.mrf.mxu0
        %v720 = vadd.f32 %v479, %v719
        %v721 = vpop.f32.mrf.mxu0
        %v722 = vpop.f32.mrf.mxu0
        %v723 = vadd.f32 %v479, %v722
        %v724 = vpop.f32.mrf.mxu0
        %725 = vmatprep.mubr.bf16.mxu0 0
        %726 = vmatmul.mubr.bf16.gmra.mxu0 %v598
        %v727 = vpop.f32.mrf.mxu0
        %v728 = vadd.f32 %v479, %v727
        %v729 = vpop.f32.mrf.mxu0
        %v730 = vpop.f32.mrf.mxu0
        %v731 = vadd.f32 %v479, %v730
        %v732 = vpop.f32.mrf.mxu0
        %733 = vmatprep.mubr.bf16.mxu0 0
        %734 = vmatmul.mubr.bf16.gmra.mxu0 %v601
        %v735 = vpop.f32.mrf.mxu0
        %v736 = vadd.f32 %v479, %v735
        %v737 = vpop.f32.mrf.mxu0
        %v738 = vpop.f32.mrf.mxu0
        %v739 = vadd.f32 %v479, %v738
        %v740 = vpop.f32.mrf.mxu0
        %741 = vmatprep.mubr.bf16.mxu0 0
        %742 = vmatmul.mubr.bf16.gmra.mxu0 %v604
        %v743 = vpop.f32.mrf.mxu0
        %v744 = vadd.f32 %v479, %v743
        %v745 = vpop.f32.mrf.mxu0
        %v746 = vpop.f32.mrf.mxu0
        %v747 = vadd.f32 %v479, %v746
        %v748 = vpop.f32.mrf.mxu0
        %749 = vmatprep.mubr.bf16.mxu0 0
        %750 = vmatmul.mubr.bf16.gmra.mxu0 %v607
        %v751 = vpop.f32.mrf.mxu0
        %v752 = vadd.f32 %v479, %v751
        %v753 = vpop.f32.mrf.mxu0
        %v754 = vpop.f32.mrf.mxu0
        %v755 = vadd.f32 %v479, %v754
        %v756 = vpop.f32.mrf.mxu0
        %757 = vdwg.mxu0
        %v758 = vmax.f32 %v648, 0.0
        %v759 = vmax.f32 %v651, 0.0
        %v760 = vmax.f32 %v656, 0.0
        %v761 = vmax.f32 %v659, 0.0
        %v762 = vmax.f32 %v664, 0.0
        %v763 = vmax.f32 %v667, 0.0
        %v764 = vmax.f32 %v672, 0.0
        %v765 = vmax.f32 %v675, 0.0
        %v766 = vmax.f32 %v680, 0.0
        %v767 = vmax.f32 %v683, 0.0
        %v768 = vmax.f32 %v688, 0.0
        %v769 = vmax.f32 %v691, 0.0
        %v770 = vmax.f32 %v696, 0.0
        %v771 = vmax.f32 %v699, 0.0
        %v772 = vmax.f32 %v704, 0.0
        %v773 = vmax.f32 %v707, 0.0
        %v774 = vmax.f32 %v712, 0.0
        %v775 = vmax.f32 %v715, 0.0
        %v776 = vmax.f32 %v720, 0.0
        %v777 = vmax.f32 %v723, 0.0
        %v778 = vmax.f32 %v728, 0.0
        %v779 = vmax.f32 %v731, 0.0
        %v780 = vmax.f32 %v736, 0.0
        %v781 = vmax.f32 %v739, 0.0
        %v782 = vmax.f32 %v744, 0.0
        %v783 = vmax.f32 %v747, 0.0
        %v784 = vmax.f32 %v752, 0.0
        %v785 = vmax.f32 %v755, 0.0
        %v786 = vld [vmem:[%s3] sm:$0x1]
        %v788 = vlaneseq
        %v789 = vshrl.u32 %v788, 7
        %v790 = vsub.s32 0, %v789
        %v791 = vrot.slane %v786, %v790
        %v793 = vmul.f32 %v758, %v791
        %v794 = vmul.f32 %v759, %v791
        %v795 = vmul.f32 %v760, %v791
        %v796 = vmul.f32 %v761, %v791
        %v797 = vmul.f32 %v762, %v791
        %v798 = vmul.f32 %v763, %v791
        %v799 = vmul.f32 %v764, %v791
        %v800 = vmul.f32 %v765, %v791
        %v801 = vmul.f32 %v766, %v791
        %v802 = vmul.f32 %v767, %v791
        %v803 = vmul.f32 %v768, %v791
        %v804 = vmul.f32 %v769, %v791
        %v805 = vmul.f32 %v770, %v791
        %v806 = vmul.f32 %v771, %v791
        %v807 = vmul.f32 %v772, %v791
        %v808 = vmul.f32 %v773, %v791
        %v809 = vmul.f32 %v774, %v791
        %v810 = vmul.f32 %v775, %v791
        %v811 = vmul.f32 %v776, %v791
        %v812 = vmul.f32 %v777, %v791
        %v813 = vmul.f32 %v778, %v791
        %v814 = vmul.f32 %v779, %v791
        %v815 = vmul.f32 %v780, %v791
        %v816 = vmul.f32 %v781, %v791
        %v817 = vmul.f32 %v782, %v791
        %v818 = vmul.f32 %v783, %v791
        %v819 = vmul.f32 %v784, %v791
        %v820 = vmul.f32 %v785, %v791
        %v821 = vld [vmem:[%s4] sm:$0x1]
        %v823 = vlaneseq
        %v824 = vshrl.u32 %v823, 7
        %v825 = vsub.s32 0, %v824
        %v826 = vrot.slane %v821, %v825
        %v828 = vadd.f32 %v793, %v826
        %v829 = vadd.f32 %v794, %v826
        %v830 = vadd.f32 %v795, %v826
        %v831 = vadd.f32 %v796, %v826
        %v832 = vadd.f32 %v797, %v826
        %v833 = vadd.f32 %v798, %v826
        %v834 = vadd.f32 %v799, %v826
        %v835 = vadd.f32 %v800, %v826
        %v836 = vadd.f32 %v801, %v826
        %v837 = vadd.f32 %v802, %v826
        %v838 = vadd.f32 %v803, %v826
        %v839 = vadd.f32 %v804, %v826
        %v840 = vadd.f32 %v805, %v826
        %v841 = vadd.f32 %v806, %v826
        %v842 = vadd.f32 %v807, %v826
        %v843 = vadd.f32 %v808, %v826
        %v844 = vadd.f32 %v809, %v826
        %v845 = vadd.f32 %v810, %v826
        %v846 = vadd.f32 %v811, %v826
        %v847 = vadd.f32 %v812, %v826
        %v848 = vadd.f32 %v813, %v826
        %v849 = vadd.f32 %v814, %v826
        %v850 = vadd.f32 %v815, %v826
        %v851 = vadd.f32 %v816, %v826
        %v852 = vadd.f32 %v817, %v826
        %v853 = vadd.f32 %v818, %v826
        %v854 = vadd.f32 %v819, %v826
        %v855 = vadd.f32 %v820, %v826
        %v856 = vmax.f32 %v828, %v835
        %v857 = vmax.f32 %v829, %v836
        %v858 = vmax.f32 %v830, %v837
        %v859 = vmax.f32 %v831, %v838
        %v860 = vmax.f32 %v832, %v839
        %v861 = vmax.f32 %v833, %v840
        %v862 = vmax.f32 %v834, %v841
        %v863 = vmax.f32 %v842, %v849
        %v864 = vmax.f32 %v843, %v850
        %v865 = vmax.f32 %v844, %v851
        %v866 = vmax.f32 %v845, %v852
        %v867 = vmax.f32 %v846, %v853
        %v868 = vmax.f32 %v847, %v854
        %v869 = vmax.f32 %v848, %v855
        %v870 = vmax.f32 %v856, %v863
        %v871 = vmax.f32 %v857, %v864
        %v872 = vmax.f32 %v858, %v865
        %v873 = vmax.f32 %v859, %v866
        %v874 = vmax.f32 %v860, %v867
        %v875 = vmax.f32 %v861, %v868
        %v876 = vmax.f32 %v862, %v869
        %vm883 = vcmask 1046528
        %v884 = vrot.slane %v870, 1
        %v885 = vrot.slane %v871, 1
        %v886 = vsel %vm883, %v884, %v885
        %v887 = vrot.slane %v872, 1
        %v888 = vsel %vm883, %v885, %v887
        %v889 = vrot.slane %v873, 1
        %v890 = vsel %vm883, %v887, %v889
        %v891 = vrot.slane %v874, 1
        %v892 = vsel %vm883, %v889, %v891
        %v893 = vrot.slane %v875, 1
        %v894 = vsel %vm883, %v891, %v893
        %895 = vrot.lane.b32.xlu0 %v886, 16
        %v896 = vpop.permute.xlu0 %895
        %897 = vrot.lane.b32.xlu0 %v888, 16
        %v898 = vpop.permute.xlu0 %897
        %899 = vrot.lane.b32.xlu0 %v890, 16
        %v900 = vpop.permute.xlu0 %899
        %901 = vrot.lane.b32.xlu0 %v892, 16
        %v902 = vpop.permute.xlu0 %901
        %903 = vrot.lane.b32.xlu0 %v894, 16
        %v904 = vpop.permute.xlu0 %903
        %vm910 = vcmask 1045504
        %v911 = vrot.slane %v870, 2
        %v912 = vrot.slane %v871, 2
        %v913 = vsel %vm910, %v911, %v912
        %v914 = vrot.slane %v872, 2
        %v915 = vsel %vm910, %v912, %v914
        %v916 = vrot.slane %v873, 2
        %v917 = vsel %vm910, %v914, %v916
        %v918 = vrot.slane %v874, 2
        %v919 = vsel %vm910, %v916, %v918
        %v920 = vrot.slane %v875, 2
        %v921 = vsel %vm910, %v918, %v920
        %922 = vrot.lane.b32.xlu0 %v913, 32
        %v923 = vpop.permute.xlu0 %922
        %924 = vrot.lane.b32.xlu0 %v915, 32
        %v925 = vpop.permute.xlu0 %924
        %926 = vrot.lane.b32.xlu0 %v917, 32
        %v927 = vpop.permute.xlu0 %926
        %928 = vrot.lane.b32.xlu0 %v919, 32
        %v929 = vpop.permute.xlu0 %928
        %930 = vrot.lane.b32.xlu0 %v921, 32
        %v931 = vpop.permute.xlu0 %930
        %vm937 = vcmask 1040384
        %v938 = vrot.slane %v870, 7
        %v939 = vrot.slane %v871, 7
        %v940 = vsel %vm937, %v938, %v939
        %v941 = vrot.slane %v872, 7
        %v942 = vsel %vm937, %v939, %v941
        %v943 = vrot.slane %v873, 7
        %v944 = vsel %vm937, %v941, %v943
        %v945 = vrot.slane %v874, 7
        %v946 = vsel %vm937, %v943, %v945
        %v947 = vrot.slane %v875, 7
        %v948 = vsel %vm937, %v945, %v947
        %949 = vrot.lane.b32.xlu0 %v940, 48
        %v950 = vpop.permute.xlu0 %949
        %951 = vrot.lane.b32.xlu0 %v942, 48
        %v952 = vpop.permute.xlu0 %951
        %953 = vrot.lane.b32.xlu0 %v944, 48
        %v954 = vpop.permute.xlu0 %953
        %955 = vrot.lane.b32.xlu0 %v946, 48
        %v956 = vpop.permute.xlu0 %955
        %957 = vrot.lane.b32.xlu0 %v948, 48
        %v958 = vpop.permute.xlu0 %957
        %964 = vrot.lane.b32.xlu0 %v871, 64
        %v965 = vpop.permute.xlu0 %964
        %966 = vrot.lane.b32.xlu0 %v872, 64
        %v967 = vpop.permute.xlu0 %966
        %968 = vrot.lane.b32.xlu0 %v873, 64
        %v969 = vpop.permute.xlu0 %968
        %970 = vrot.lane.b32.xlu0 %v874, 64
        %v971 = vpop.permute.xlu0 %970
        %972 = vrot.lane.b32.xlu0 %v875, 64
        %v973 = vpop.permute.xlu0 %972
        %v980 = vrot.slane %v876, 1
        %v981 = vsel %vm883, %v893, %v980
        %982 = vrot.lane.b32.xlu0 %v888, 80
        %v983 = vpop.permute.xlu0 %982
        %984 = vrot.lane.b32.xlu0 %v890, 80
        %v985 = vpop.permute.xlu0 %984
        %986 = vrot.lane.b32.xlu0 %v892, 80
        %v987 = vpop.permute.xlu0 %986
        %988 = vrot.lane.b32.xlu0 %v894, 80
        %v989 = vpop.permute.xlu0 %988
        %990 = vrot.lane.b32.xlu0 %v981, 80
        %v991 = vpop.permute.xlu0 %990
        %v997 = vrot.slane %v871, 6
        %v998 = vrot.slane %v872, 6
        %v999 = vsel %vm609, %v997, %v998
        %v1000 = vrot.slane %v873, 6
        %v1001 = vsel %vm609, %v998, %v1000
        %v1002 = vrot.slane %v874, 6
        %v1003 = vsel %vm609, %v1000, %v1002
        %v1004 = vrot.slane %v875, 6
        %v1005 = vsel %vm609, %v1002, %v1004
        %v1006 = vrot.slane %v876, 6
        %v1007 = vsel %vm609, %v1004, %v1006
        %1008 = vrot.lane.b32.xlu0 %v999, 96
        %v1009 = vpop.permute.xlu0 %1008
        %1010 = vrot.lane.b32.xlu0 %v1001, 96
        %v1011 = vpop.permute.xlu0 %1010
        %1012 = vrot.lane.b32.xlu0 %v1003, 96
        %v1013 = vpop.permute.xlu0 %1012
        %1014 = vrot.lane.b32.xlu0 %v1005, 96
        %v1015 = vpop.permute.xlu0 %1014
        %1016 = vrot.lane.b32.xlu0 %v1007, 96
        %v1017 = vpop.permute.xlu0 %1016
        %v1023 = vrot.slane %v876, 7
        %v1024 = vsel %vm937, %v947, %v1023
        %1025 = vrot.lane.b32.xlu0 %v942, 112
        %v1026 = vpop.permute.xlu0 %1025
        %1027 = vrot.lane.b32.xlu0 %v944, 112
        %v1028 = vpop.permute.xlu0 %1027
        %1029 = vrot.lane.b32.xlu0 %v946, 112
        %v1030 = vpop.permute.xlu0 %1029
        %1031 = vrot.lane.b32.xlu0 %v948, 112
        %v1032 = vpop.permute.xlu0 %1031
        %1033 = vrot.lane.b32.xlu0 %v1024, 112
        %v1034 = vpop.permute.xlu0 %1033
        %vm1040 = vcmask 130048
        %v1041 = vsel %vm1040, %v870, %v896
        %v1042 = vsel %vm1040, %v871, %v898
        %v1043 = vsel %vm1040, %v872, %v900
        %v1044 = vsel %vm1040, %v873, %v902
        %v1045 = vsel %vm1040, %v874, %v904
        %vm1046 = vcmask 261120
        %v1047 = vsel %vm1046, %v1041, %v923
        %v1048 = vsel %vm1046, %v1042, %v925
        %v1049 = vsel %vm1046, %v1043, %v927
        %v1050 = vsel %vm1046, %v1044, %v929
        %v1051 = vsel %vm1046, %v1045, %v931
        %vm1052 = vcmask 392192
        %v1053 = vsel %vm1052, %v1047, %v950
        %v1054 = vsel %vm1052, %v1048, %v952
        %v1055 = vsel %vm1052, %v1049, %v954
        %v1056 = vsel %vm1052, %v1050, %v956
        %v1057 = vsel %vm1052, %v1051, %v958
        %vm1058 = vcmask 523264
        %v1059 = vsel %vm1058, %v1053, %v965
        %v1060 = vsel %vm1058, %v1054, %v967
        %v1061 = vsel %vm1058, %v1055, %v969
        %v1062 = vsel %vm1058, %v1056, %v971
        %v1063 = vsel %vm1058, %v1057, %v973
        %vm1064 = vcmask 654336
        %v1065 = vsel %vm1064, %v1059, %v983
        %v1066 = vsel %vm1064, %v1060, %v985
        %v1067 = vsel %vm1064, %v1061, %v987
        %v1068 = vsel %vm1064, %v1062, %v989
        %v1069 = vsel %vm1064, %v1063, %v991
        %vm1070 = vcmask 785408
        %v1071 = vsel %vm1070, %v1065, %v1009
        %v1072 = vsel %vm1070, %v1066, %v1011
        %v1073 = vsel %vm1070, %v1067, %v1013
        %v1074 = vsel %vm1070, %v1068, %v1015
        %v1075 = vsel %vm1070, %v1069, %v1017
        %vm1076 = vcmask 916480
        %v1077 = vsel %vm1076, %v1071, %v1026
        %v1078 = vsel %vm1076, %v1072, %v1028
        %v1079 = vsel %vm1076, %v1073, %v1030
        %v1080 = vsel %vm1076, %v1074, %v1032
        %v1081 = vsel %vm1076, %v1075, %v1034
        %v1082 = vpack.c.bf16 %v1078, %v1077
        %v1083 = vpack.c.bf16 %v873, %v872
        %v1084 = vpack.c.bf16 %v1080, %v1079
        %v1085 = vpack.c.bf16 %v875, %v874
        %v1086 = vpack.c.bf16 %v1081, %v1081
        %v1087 = vpack.c.bf16 %v876, %v876
        %v1088 = vld [vmem:[%s5] sm:$0xf]
        %v1089 = vld [vmem:[%s5 + $0x4] sm:$0xf]
        %v1090 = vld [vmem:[%s5 + $0x8] sm:$0xf]
        %v1091 = vld [vmem:[%s5 + $0xc] sm:$0xf]
        %v1092 = vld [vmem:[%s5 + $0x10] sm:$0xf]
        %v1093 = vld [vmem:[%s5 + $0x14] sm:$0xf]
        %v1094 = vld [vmem:[%s5 + $0x18] sm:$0xf]
        %v1095 = vld [vmem:[%s5 + $0x1c] sm:$0xf]
        %v1096 = vld [vmem:[%s5 + $0x20] sm:$0xf]
        %v1097 = vld [vmem:[%s5 + $0x24] sm:$0xf]
        %v1098 = vld [vmem:[%s5 + $0x28] sm:$0xf]
        %v1099 = vld [vmem:[%s5 + $0x2c] sm:$0xf]
        %v1100 = vld [vmem:[%s5 + $0x30] sm:$0xf]
        %v1101 = vld [vmem:[%s5 + $0x34] sm:$0xf]
        %v1102 = vld [vmem:[%s5 + $0x38] sm:$0xf]
        %v1103 = vld [vmem:[%s5 + $0x3c] sm:$0xf]
        %v1104 = vld [vmem:[%s5 + $0x40] sm:$0xf]
        %v1105 = vld [vmem:[%s5 + $0x44] sm:$0xf]
        %v1106 = vld [vmem:[%s6] sm:$0x1]
        %v1108 = vlaneseq
        %v1109 = vshrl.u32 %v1108, 7
        %v1110 = vsub.s32 0, %v1109
        %v1111 = vrot.slane %v1106, %v1110
        %v1131 = vunpack.c.l.b16 %v1088
        %v1132 = vunpack.c.l.b16 %v1089
        %v1133 = vunpack.c.l.b16 %v1090
        %v1134 = vunpack.c.l.b16 %v1091
        %v1135 = vunpack.c.l.b16 %v1092
        %v1136 = vunpack.c.l.b16 %v1093
        %v1137 = vunpack.c.l.b16 %v1094
        %v1138 = vunpack.c.l.b16 %v1095
        %v1139 = vunpack.c.l.b16 %v1096
        %v1140 = vunpack.c.l.b16 %v1097
        %v1141 = vunpack.c.l.b16 %v1098
        %v1142 = vunpack.c.l.b16 %v1099
        %v1143 = vunpack.c.l.b16 %v1100
        %v1144 = vunpack.c.l.b16 %v1101
        %v1145 = vunpack.c.l.b16 %v1102
        %v1146 = vunpack.c.l.b16 %v1103
        %v1147 = vunpack.c.l.b16 %v1104
        %v1148 = vunpack.c.l.b16 %v1105
        %v1149 = vpack.c.b16 %v1132, %v1131
        %v1150 = vpack.c.b16 %v1134, %v1133
        %v1151 = vpack.c.b16 %v1136, %v1135
        %v1152 = vpack.c.b16 %v1138, %v1137
        %v1153 = vpack.c.b16 %v1140, %v1139
        %v1154 = vpack.c.b16 %v1142, %v1141
        %v1155 = vpack.c.b16 %v1144, %v1143
        %v1156 = vpack.c.b16 %v1146, %v1145
        %v1157 = vpack.c.b16 %v1148, %v1147
        %v1168 = vsel %vm1040, %v1083, 0
        %v1171 = vsel %vm1040, %v1085, 0
        %v1174 = vsel %vm1040, %v1087, 0
        %1176 = vmatprep.subr.bf16.mxu0 0
        %1177 = vmatpush1.bf16.msra.mxu0 %v1156
        %1178 = vmatprep.subr.bf16.mxu0 0
        %1179 = vmatpush1.bf16.msra.mxu0 %v1155
        %1180 = vmatprep.subr.bf16.mxu0 0
        %1181 = vmatpush1.bf16.msra.mxu0 %v1154
        %1182 = vmatprep.subr.bf16.mxu0 0
        %1183 = vmatpush1.bf16.msra.mxu0 %v1153
        %1184 = vmatprep.subr.bf16.mxu0 0
        %1185 = vmatpush1.bf16.msra.mxu0 %v1152
        %1186 = vmatprep.subr.bf16.mxu0 0
        %1187 = vmatpush1.bf16.msra.mxu0 %v1151
        %1188 = vmatprep.subr.bf16.mxu0 0
        %1189 = vmatpush1.bf16.msra.mxu0 %v1150
        %1190 = vmatprep.subr.bf16.mxu0 0
        %1191 = vmatpush1.bf16.msra.mxu0 %v1149
        %1192 = vmatprep.subr.bf16.mxu0 0
        %1193 = vmatpush2.bf16.msra.mxu0 0
        %1194 = vmatprep.subr.bf16.mxu0 0
        %1195 = vmatpush2.bf16.msra.mxu0 0
        %1196 = vmatprep.subr.bf16.mxu0 0
        %1197 = vmatpush2.bf16.msra.mxu0 0
        %1198 = vmatprep.subr.bf16.mxu0 0
        %1199 = vmatpush2.bf16.msra.mxu0 0
        %1200 = vmatprep.subr.bf16.mxu0 0
        %1201 = vmatpush2.bf16.msra.mxu0 0
        %1202 = vmatprep.subr.bf16.mxu0 0
        %1203 = vmatpush2.bf16.msra.mxu0 0
        %1204 = vmatprep.subr.bf16.mxu0 0
        %1205 = vmatpush2.bf16.msra.mxu0 0
        %1206 = vmatprep.subr.bf16.mxu0 0
        %1207 = vmatpush2.bf16.msra.mxu0 %v1157
        %1208 = vmatprep.mubr.bf16.mxu0 %v1168
        %1209 = vmatmul.mubr.bf16.gmra.mxu0 %v1082
        %v1210 = vpop.f32.mrf.mxu0
        %v1211 = vadd.f32 %v1111, %v1210
        %v1212 = vpop.f32.mrf.mxu0
        %v1213 = vpop.f32.mrf.mxu0
        %v1214 = vadd.f32 %v1111, %v1213
        %v1215 = vpop.f32.mrf.mxu0
        %1216 = vmatprep.mubr.bf16.mxu0 %v1171
        %1217 = vmatmul.mubr.bf16.gmra.mxu0 %v1084
        %v1218 = vpop.f32.mrf.mxu0
        %v1219 = vadd.f32 %v1111, %v1218
        %v1220 = vpop.f32.mrf.mxu0
        %v1221 = vpop.f32.mrf.mxu0
        %v1222 = vadd.f32 %v1111, %v1221
        %v1223 = vpop.f32.mrf.mxu0
        %1224 = vmatprep.mubr.bf16.mxu0 %v1174
        %1225 = vmatmul.mubr.bf16.gmra.mxu0 %v1086
        %v1226 = vpop.f32.mrf.mxu0
        %v1227 = vpop.f32.mrf.mxu0
        %v1228 = vpop.f32.mrf.mxu0
        %v1229 = vpop.f32.mrf.mxu0
        %1230 = vdwg.mxu0
        %v1231 = vmax.f32 %v1211, 0.0
        %v1232 = vmax.f32 %v1214, 0.0
        %v1233 = vmax.f32 %v1219, 0.0
        %v1234 = vmax.f32 %v1222, 0.0
        %v1235 = vld [vmem:[%s7] sm:$0x1]
        %v1237 = vlaneseq
        %v1238 = vshrl.u32 %v1237, 7
        %v1239 = vsub.s32 0, %v1238
        %v1240 = vrot.slane %v1235, %v1239
        %v1242 = vmul.f32 %v1231, %v1240
        %v1243 = vmul.f32 %v1232, %v1240
        %v1244 = vmul.f32 %v1233, %v1240
        %v1245 = vmul.f32 %v1234, %v1240
        %v1246 = vld [vmem:[%s8] sm:$0x1]
        %v1248 = vlaneseq
        %v1249 = vshrl.u32 %v1248, 7
        %v1250 = vsub.s32 0, %v1249
        %v1251 = vrot.slane %v1246, %v1250
        %v1253 = vadd.f32 %v1242, %v1251
        %v1254 = vadd.f32 %v1243, %v1251
        %v1255 = vadd.f32 %v1244, %v1251
        %v1256 = vadd.f32 %v1245, %v1251
        %v1258 = vrot.slane %v1253, 1
        %v1260 = vmax.f32 %v1253, %v1258
        %v1262 = vrot.slane %v1254, 1
        %v1264 = vmax.f32 %v1253, %v1262
        %v1266 = vrot.slane %v1264, 7
        %v1268 = vmax.f32 %v1260, %v1266
        %v1269 = vmax.f32 %v1254, %v1262
        %v1271 = vrot.slane %v1269, 7
        %v1273 = vmax.f32 %v1260, %v1271
        %v1275 = vrot.slane %v1255, 1
        %v1277 = vmax.f32 %v1255, %v1275
        %v1279 = vrot.slane %v1277, 7
        %v1281 = vmax.f32 %v1269, %v1279
        %v1283 = vrot.slane %v1256, 1
        %v1285 = vmax.f32 %v1255, %v1283
        %v1287 = vrot.slane %v1285, 7
        %v1289 = vmax.f32 %v1277, %v1287
        %v1291 = vrot.slane %v1273, 2
        %1292 = vrot.lane.b32.xlu0 %v1291, 32
        %v1293 = vpop.permute.xlu0 %1292
        %v1296 = vrot.slane %v1281, 6
        %1297 = vrot.lane.b32.xlu0 %v1296, 64
        %v1298 = vpop.permute.xlu0 %1297
        %1301 = vrot.lane.b32.xlu0 %v1289, 96
        %v1302 = vpop.permute.xlu0 %1301
        %v1304 = vsel %vm1046, %v1268, %v1293
        %v1305 = vsel %vm1058, %v1304, %v1298
        %v1306 = vsel %vm1070, %v1305, %v1302
        %v1307 = vpack.c.bf16 %v1306, %v1306
        %v1308 = vld [vmem:[%s9] sm:$0xf]
        %v1309 = vld [vmem:[%s9 + $0x4] sm:$0xf]
        %v1310 = vld [vmem:[%s9 + $0x8] sm:$0xf]
        %v1311 = vld [vmem:[%s9 + $0xc] sm:$0xf]
        %v1312 = vld [vmem:[%s9 + $0x10] sm:$0xf]
        %v1313 = vld [vmem:[%s9 + $0x14] sm:$0xf]
        %v1314 = vld [vmem:[%s9 + $0x18] sm:$0xf]
        %v1315 = vld [vmem:[%s9 + $0x1c] sm:$0xf]
        %v1316 = vld [vmem:[%s9 + $0x20] sm:$0xf]
        %v1317 = vld [vmem:[%s9 + $0x24] sm:$0xf]
        %v1318 = vld [vmem:[%s9 + $0x28] sm:$0xf]
        %v1319 = vld [vmem:[%s9 + $0x2c] sm:$0xf]
        %v1320 = vld [vmem:[%s9 + $0x30] sm:$0xf]
        %v1321 = vld [vmem:[%s9 + $0x34] sm:$0xf]
        %v1322 = vld [vmem:[%s9 + $0x38] sm:$0xf]
        %v1323 = vld [vmem:[%s9 + $0x3c] sm:$0xf]
        %v1324 = vld [vmem:[%s10] sm:$0x1]
        %v1341 = vunpack.c.l.b16 %v1308
        %v1342 = vunpack.c.l.b16 %v1309
        %v1343 = vunpack.c.l.b16 %v1310
        %v1344 = vunpack.c.l.b16 %v1311
        %v1345 = vunpack.c.l.b16 %v1312
        %v1346 = vunpack.c.l.b16 %v1313
        %v1347 = vunpack.c.l.b16 %v1314
        %v1348 = vunpack.c.l.b16 %v1315
        %v1349 = vunpack.c.l.b16 %v1316
        %v1350 = vunpack.c.l.b16 %v1317
        %v1351 = vunpack.c.l.b16 %v1318
        %v1352 = vunpack.c.l.b16 %v1319
        %v1353 = vunpack.c.l.b16 %v1320
        %v1354 = vunpack.c.l.b16 %v1321
        %v1355 = vunpack.c.l.b16 %v1322
        %v1356 = vunpack.c.l.b16 %v1323
        %v1357 = vpack.c.b16 %v1342, %v1341
        %v1358 = vpack.c.b16 %v1344, %v1343
        %v1359 = vpack.c.b16 %v1346, %v1345
        %v1360 = vpack.c.b16 %v1348, %v1347
        %v1361 = vpack.c.b16 %v1350, %v1349
        %v1362 = vpack.c.b16 %v1352, %v1351
        %v1363 = vpack.c.b16 %v1354, %v1353
        %v1364 = vpack.c.b16 %v1356, %v1355
        %1373 = vmatprep.subr.bf16.mxu0 0
        %1374 = vmatpush1.bf16.msra.mxu0 %v1364
        %1375 = vmatprep.subr.bf16.mxu0 0
        %1376 = vmatpush1.bf16.msra.mxu0 %v1363
        %1377 = vmatprep.subr.bf16.mxu0 0
        %1378 = vmatpush1.bf16.msra.mxu0 %v1362
        %1379 = vmatprep.subr.bf16.mxu0 0
        %1380 = vmatpush1.bf16.msra.mxu0 %v1361
        %1381 = vmatprep.subr.bf16.mxu0 0
        %1382 = vmatpush1.bf16.msra.mxu0 %v1360
        %1383 = vmatprep.subr.bf16.mxu0 0
        %1384 = vmatpush1.bf16.msra.mxu0 %v1359
        %1385 = vmatprep.subr.bf16.mxu0 0
        %1386 = vmatpush1.bf16.msra.mxu0 %v1358
        %1387 = vmatprep.subr.bf16.mxu0 0
        %1388 = vmatpush1.bf16.msra.mxu0 %v1357
        %1389 = vmatprep.subr.bf16.mxu0 0
        %1390 = vmatpush2.bf16.msra.mxu0 0
        %1391 = vmatprep.subr.bf16.mxu0 0
        %1392 = vmatpush2.bf16.msra.mxu0 0
        %1393 = vmatprep.subr.bf16.mxu0 0
        %1394 = vmatpush2.bf16.msra.mxu0 0
        %1395 = vmatprep.subr.bf16.mxu0 0
        %1396 = vmatpush2.bf16.msra.mxu0 0
        %1397 = vmatprep.subr.bf16.mxu0 0
        %1398 = vmatpush2.bf16.msra.mxu0 0
        %1399 = vmatprep.subr.bf16.mxu0 0
        %1400 = vmatpush2.bf16.msra.mxu0 0
        %1401 = vmatprep.subr.bf16.mxu0 0
        %1402 = vmatpush2.bf16.msra.mxu0 0
        %1403 = vmatprep.subr.bf16.mxu0 0
        %1404 = vmatpush2.bf16.msra.mxu0 0
        %1405 = vmatprep.mubr.bf16.mxu0 0
        %1406 = vmatmul.mubr.bf16.gmra.mxu0 %v1307
        %v1407 = vpop.f32.mrf.mxu0
        %v1408 = vadd.f32 %v1324, %v1407
        %v1409 = vpop.f32.mrf.mxu0
        %v1410 = vpop.f32.mrf.mxu0
        %v1411 = vpop.f32.mrf.mxu0
        %1412 = vdwg.mxu0
        %v1413 = vmax.f32 %v1408, 0.0
        %v1414 = vpack.c.bf16 %v1413, %v1413
        %v1415 = vld [vmem:[%s11] sm:$0xf]
        %v1416 = vld [vmem:[%s11 + $0x4] sm:$0xf]
        %v1417 = vld [vmem:[%s11 + $0x8] sm:$0xf]
        %v1418 = vld [vmem:[%s11 + $0xc] sm:$0xf]
        %v1419 = vld [vmem:[%s12] sm:$0x1]
        %v1424 = vunpack.c.l.b16 %v1415
        %v1425 = vunpack.c.l.b16 %v1416
        %v1426 = vunpack.c.l.b16 %v1417
        %v1427 = vunpack.c.l.b16 %v1418
        %v1428 = vpack.c.b16 %v1425, %v1424
        %v1429 = vpack.c.b16 %v1427, %v1426
        %v1433 = vsel %vm1046, %v1414, 0
        %1435 = vmatprep.subr.bf16.mxu0 0
        %1436 = vmatpush1.bf16.msra.mxu0 0
        %1437 = vmatprep.subr.bf16.mxu0 0
        %1438 = vmatpush1.bf16.msra.mxu0 0
        %1439 = vmatprep.subr.bf16.mxu0 0
        %1440 = vmatpush1.bf16.msra.mxu0 0
        %1441 = vmatprep.subr.bf16.mxu0 0
        %1442 = vmatpush1.bf16.msra.mxu0 0
        %1443 = vmatprep.subr.bf16.mxu0 0
        %1444 = vmatpush1.bf16.msra.mxu0 0
        %1445 = vmatprep.subr.bf16.mxu0 0
        %1446 = vmatpush1.bf16.msra.mxu0 0
        %1447 = vmatprep.subr.bf16.mxu0 0
        %1448 = vmatpush1.bf16.msra.mxu0 %v1429
        %1449 = vmatprep.subr.bf16.mxu0 0
        %1450 = vmatpush1.bf16.msra.mxu0 %v1428
        %1451 = vmatprep.subr.bf16.mxu0 0
        %1452 = vmatpush2.bf16.msra.mxu0 0
        %1453 = vmatprep.subr.bf16.mxu0 0
        %1454 = vmatpush2.bf16.msra.mxu0 0
        %1455 = vmatprep.subr.bf16.mxu0 0
        %1456 = vmatpush2.bf16.msra.mxu0 0
        %1457 = vmatprep.subr.bf16.mxu0 0
        %1458 = vmatpush2.bf16.msra.mxu0 0
        %1459 = vmatprep.subr.bf16.mxu0 0
        %1460 = vmatpush2.bf16.msra.mxu0 0
        %1461 = vmatprep.subr.bf16.mxu0 0
        %1462 = vmatpush2.bf16.msra.mxu0 0
        %1463 = vmatprep.subr.bf16.mxu0 0
        %1464 = vmatpush2.bf16.msra.mxu0 0
        %1465 = vmatprep.subr.bf16.mxu0 0
        %1466 = vmatpush2.bf16.msra.mxu0 0
        %1467 = vmatprep.mubr.bf16.mxu0 0
        %1468 = vmatmul.mubr.bf16.gmra.mxu0 %v1433
        %v1469 = vpop.f32.mrf.mxu0
        %v1470 = vadd.f32 %v1419, %v1469
        %v1471 = vpop.f32.mrf.mxu0
        %v1472 = vpop.f32.mrf.mxu0
        %v1473 = vpop.f32.mrf.mxu0
        %1474 = vdwg.mxu0
        %1475 = vst [vmem:[%s433] sm:$0x1] %v1470
        %s1476 = sand.u32 %s313, 1
        %s1477 = scalar_lea.sflag [#allocation3], %s1476
        %s1478 = sand.u32 %s313, 1
        %s1479 = scalar_lea.vmem [#allocation2], %s1478
        // Predicated region
        $region73: #{simple_cnn_forward.1} parent=71 // pred_check
          %p1480 = pneg %p323
        $region74: #{simple_cnn_forward.1} parent=71 // pred_check_branch
          %1482 = sbr.rel (%p1480) target = $region76
        $region75: #{simple_cnn_forward.1} parent=71 // pred_region
          %s1484 = ssub.s32 16, 16
          %1485 = vsyncadd %s1477, %s1484
          %s1486 = smul.addr %s27, 16
          %s1487 = scalar_lea.hbm %s13, %s1486
          %s1489 = sshll.u32 %s1479, 4
          %s1490 = int_to_ptr.vmem [resolvable:$true] %s1489
          %1492 = dma.vmem_to_hbm [thread:$0]  %s1490, 16, %s1487, %s1477
        $region76: #{simple_cnn_forward.1} parent=71 // pred_fallthru
          _
      $region72: #{simple_cnn_forward.1} parent=5 // pred_fallthru
        _
      %p1493 = scmp.le.s32.totalorder 2, %s22
      // Predicated region
      $region77: #{simple_cnn_forward.1} parent=5 // pred_check
        %p1494 = pneg %p1493
      $region78: #{simple_cnn_forward.1} parent=5 // pred_check_branch
        %1496 = sbr.rel (%p1494) target = $region80
      $region79: #{simple_cnn_forward.1} parent=5 // pred_region
        %s1497 = ssub.s32 %s22, 2
        // Predicated region
        $region81: #{simple_cnn_forward.1} parent=79 // pred_check
          %p1498 = pneg %p329
        $region82: #{simple_cnn_forward.1} parent=79 // pred_check_branch
          %1500 = sbr.rel (%p1498) target = $region84
        $region83: #{simple_cnn_forward.1} parent=79 // pred_region
          %s1501 = sand.u32 %s314, 1
          %s1502 = scalar_lea.sflag [#allocation3], %s1501
          %s1503 = sand.u32 %s314, 1
          %s1504 = scalar_lea.vmem [#allocation2], %s1503
          %1505 = dma.done %s1502, 16
        $region84: #{simple_cnn_forward.1} parent=79 // pred_fallthru
          _
      $region80: #{simple_cnn_forward.1} parent=5 // pred_fallthru
        _
    $region6: #{simple_cnn_forward.1} parent=1 // loop_footer
      %s26 = sadd.s32 1, %s22
    $region7: #{simple_cnn_forward.1} parent=1 // loop_footer_branch
      %21 = sbr.rel target = $region3
    $region8: #{simple_cnn_forward.1} parent=1 // loop_exit
      _
    %1506 = vsyncpa [#allocation3], 1
    %s1507 = scalar_lea.sflag [#allocation3], 1
    %1508 = vsyncpa %s1507, 1

</llo_original>
